<compile_context>
chip_gen: v7x
topology: tpu7x:2x2x1
jax: 0.10.0
libtpu: 0.0.40
codegen_flags: <defaults>
</compile_context>

<pallas_src>
import math

import jax
import jax.numpy as jnp
from jax import lax
from jax.experimental import pallas as pl
from jax.experimental.pallas import tpu as pltpu

# ---- model hyper-parameters (small, consistent with the module) -------------
S = 8          # sequence length
B = 2          # batch
D_MODEL = 32   # d_model
NHEAD = 4      # nhead
DIM_FF = 64    # dim_feedforward
HEAD_DIM = D_MODEL // NHEAD
N_TOK = B * S
LN_EPS = 1e-5


def _layer_norm(x, gamma, beta, eps=LN_EPS):
    # x: (N, D); gamma/beta: (1, D)
    mu = jnp.mean(x, axis=-1, keepdims=True)
    xc = x - mu
    var = jnp.mean(xc * xc, axis=-1, keepdims=True)
    inv = lax.rsqrt(var + eps)
    return xc * inv * gamma + beta


def encoder_layer_kernel(src_ref, pos_ref, wa_ref, wb_ref, vecs_ref, out_ref):
    """One post-norm encoder layer on the full (B, S, D) problem.

    src_ref / pos_ref : (B, S, D) VMEM
    wa_ref            : (2D, 2D)   rows [0:D)  = fused [Wq | Wk]  (x @ W form)
                                   rows [D:2D) = W1 (D, F)
    wb_ref            : (2D+F, D)  rows [0:D)    = Wv
                                   rows [D:2D)   = Wo
                                   rows [2D:2D+F)= W2
    vecs_ref          : (6, 2D)    row0=[bq|bk] row1=[bv|bo] row2=b1
                                   row3=[b2|g1] row4=[be1|g2] row5=[be2|0]
    out_ref           : (B*S, D)
    """
    d = D_MODEL
    f = DIM_FF
    hd = HEAD_DIM
    n = N_TOK
    scale = 1.0 / math.sqrt(hd)

    src = src_ref[...].astype(jnp.float32)            # (B, S, D)
    pos = pos_ref[...].astype(jnp.float32)

    qk_in = (src + pos).reshape(n, d)                 # q = k = src + pos
    v_in = src.reshape(n, d)                          # value / residual = src

    vecs = vecs_ref[...]                              # (6, 2D) — one padded vreg
    bqk = vecs[0:1, :]                                # (1, 2D)
    bv = vecs[1:2, 0:d]
    bo = vecs[1:2, d:2 * d]
    b1 = vecs[2:3, :]                                 # (1, F)
    b2 = vecs[3:4, 0:d]
    g1 = vecs[3:4, d:2 * d]
    be1 = vecs[4:5, 0:d]
    g2 = vecs[4:5, d:2 * d]
    be2 = vecs[5:6, 0:d]

    # ---- fused Q|K projection (single MXU pass) + V projection ----
    qkp = jnp.dot(qk_in, wa_ref[0:d, :],
                  preferred_element_type=jnp.float32) + bqk      # (N, 2D)
    q = qkp[:, 0:d] * scale
    k = qkp[:, d:2 * d]
    v = jnp.dot(v_in, wb_ref[0:d, :],
                preferred_element_type=jnp.float32) + bv         # (N, D)

    # ---- multi-head attention with out_proj folded into the head loop ----
    # (no concatenate over heads: each head contributes head_h @ Wo[h] to acc)
    attn = jnp.zeros((n, d), jnp.float32)
    for hi in range(NHEAD):
        lo = hi * hd
        qh = q[:, lo:lo + hd].reshape(B, S, hd)
        kh = k[:, lo:lo + hd].reshape(B, S, hd)
        vh = v[:, lo:lo + hd].reshape(B, S, hd)
        sc = jnp.einsum('bqc,bkc->bqk', qh, kh,
                        preferred_element_type=jnp.float32)      # (B, S, S)
        sc = sc - jnp.max(sc, axis=-1, keepdims=True)
        p = jnp.exp(sc)
        p = p / jnp.sum(p, axis=-1, keepdims=True)
        oh = jnp.einsum('bqk,bkc->bqc', p, vh,
                        preferred_element_type=jnp.float32)      # (B, S, hd)
        wo_h = wb_ref[d + lo:d + lo + hd, :]                      # (hd, D)
        attn = attn + jnp.dot(oh.reshape(n, hd), wo_h,
                              preferred_element_type=jnp.float32)
    attn = attn + bo

    # ---- residual + norm1 (dropout1 identity at inference) ----
    x = _layer_norm(v_in + attn, g1, be1)

    # ---- feed-forward: linear2(relu(linear1(x))) ----
    h1 = jnp.dot(x, wa_ref[d:2 * d, :],
                 preferred_element_type=jnp.float32) + b1        # (N, F)
    h1 = jnp.maximum(h1, 0.0)
    y = jnp.dot(h1, wb_ref[2 * d:2 * d + f, :],
                preferred_element_type=jnp.float32) + b2         # (N, D)

    # ---- residual + norm2 (dropout2 identity at inference) ----
    out_ref[...] = _layer_norm(x + y, g2, be2).astype(out_ref.dtype)


def init_params(key):
    ks = jax.random.split(key, 8)
    sc = 0.05
    p = {
        # nn.MultiheadAttention in_proj: (3D, D) weight, (3D,) bias
        "w_in": jax.random.normal(ks[0], (3 * D_MODEL, D_MODEL), jnp.float32) * sc,
        "b_in": jax.random.normal(ks[1], (3 * D_MODEL,), jnp.float32) * sc,
        # out_proj: (D, D), (D,)
        "w_out": jax.random.normal(ks[2], (D_MODEL, D_MODEL), jnp.float32) * sc,
        "b_out": jax.random.normal(ks[3], (D_MODEL,), jnp.float32) * sc,
        # linear1: (F, D), (F,); linear2: (D, F), (D,)
        "w1": jax.random.normal(ks[4], (DIM_FF, D_MODEL), jnp.float32) * sc,
        "b1": jax.random.normal(ks[5], (DIM_FF,), jnp.float32) * sc,
        "w2": jax.random.normal(ks[6], (D_MODEL, DIM_FF), jnp.float32) * sc,
        "b2": jax.random.normal(ks[7], (D_MODEL,), jnp.float32) * sc,
        # LayerNorms
        "g1": jnp.ones((D_MODEL,), jnp.float32),
        "be1": jnp.zeros((D_MODEL,), jnp.float32),
        "g2": jnp.ones((D_MODEL,), jnp.float32),
        "be2": jnp.zeros((D_MODEL,), jnp.float32),
    }
    return p


def pack_params(params):
    """One-time parameter packing (outside the per-call jit path).

    Produces exactly three kernel operands:
      wa   (2D, 2D)   : [Wq|Wk] stacked over W1      (x @ W layout)
      wb   (2D+F, D)  : Wv / Wo / W2 stacked          (x @ W layout)
      vecs (6, 2D)    : all biases + LayerNorm params
    """
    d, f = D_MODEL, DIM_FF
    assert f == 2 * d, "weight packing below assumes dim_feedforward == 2*d_model"

    w_in, b_in = params["w_in"], params["b_in"]
    wq, wk, wv = w_in[0:d].T, w_in[d:2 * d].T, w_in[2 * d:3 * d].T   # (D, D) each
    wqk = jnp.concatenate([wq, wk], axis=1)                          # (D, 2D)
    w1 = params["w1"].T                                              # (D, F)
    wa = jnp.concatenate([wqk, w1], axis=0)                          # (2D, 2D)

    wo = params["w_out"].T                                           # (D, D)
    w2 = params["w2"].T                                              # (F, D)
    wb = jnp.concatenate([wv, wo, w2], axis=0)                       # (2D+F, D)

    z = jnp.zeros((d,), jnp.float32)
    vecs = jnp.stack([
        jnp.concatenate([b_in[0:d], b_in[d:2 * d]]),                 # [bq | bk]
        jnp.concatenate([b_in[2 * d:3 * d], params["b_out"]]),       # [bv | bo]
        params["b1"],                                                # b1 (F,)
        jnp.concatenate([params["b2"], params["g1"]]),               # [b2 | g1]
        jnp.concatenate([params["be1"], params["g2"]]),              # [be1| g2]
        jnp.concatenate([params["be2"], z]),                         # [be2| 0 ]
    ], axis=0)                                                       # (6, 2D)

    return {"wa": jnp.asarray(wa, jnp.float32),
            "wb": jnp.asarray(wb, jnp.float32),
            "vecs": jnp.asarray(vecs, jnp.float32)}


@jax.jit
def transformer_encoder_layer(src_sbd, pos_sbd, packed):
    """src/pos: (S, B, D) — same convention as the PyTorch module.

    `packed` comes from pack_params() (precomputed once); the per-call path
    only does the (S,B,D)<->(B,S,D) layout changes and the pallas_call.
    """
    src_bsd = jnp.transpose(src_sbd, (1, 0, 2))
    pos_bsd = jnp.transpose(pos_sbd, (1, 0, 2))

    vmem = pl.BlockSpec(memory_space=pltpu.MemorySpace.VMEM)
    out_flat = pl.pallas_call(
        encoder_layer_kernel,
        out_shape=jax.ShapeDtypeStruct((N_TOK, D_MODEL), jnp.float32),
        in_specs=[vmem] * 5,
        out_specs=vmem,
    )(src_bsd, pos_bsd, packed["wa"], packed["wb"], packed["vecs"])

    return jnp.transpose(out_flat.reshape(B, S, D_MODEL), (1, 0, 2))  # (S, B, D)


def reference(src, pos, params):
    """Pure-JAX reference mirroring PyTorch semantics (eval mode)."""
    s, b, d = src.shape
    h, hd = NHEAD, HEAD_DIM
    qk = src + pos
    w_in, b_in = params["w_in"], params["b_in"]
    q = qk @ w_in[0:d].T + b_in[0:d]
    k = qk @ w_in[d:2 * d].T + b_in[d:2 * d]
    v = src @ w_in[2 * d:3 * d].T + b_in[2 * d:3 * d]

    def split(x):
        return jnp.transpose(x.reshape(s, b * h, hd), (1, 0, 2))

    qh, kh, vh = split(q) / math.sqrt(hd), split(k), split(v)
    sc = jnp.einsum('bqh,bkh->bqk', qh, kh)
    p = jax.nn.softmax(sc, axis=-1)
    o = jnp.einsum('bqk,bkh->bqh', p, vh)
    o = jnp.transpose(o, (1, 0, 2)).reshape(s, b, d)
    attn = o @ params["w_out"].T + params["b_out"]

    def ln(x, g, be):
        mu = x.mean(-1, keepdims=True)
        var = ((x - mu) ** 2).mean(-1, keepdims=True)
        return (x - mu) / jnp.sqrt(var + LN_EPS) * g + be

    x = ln(src + attn, params["g1"], params["be1"])
    y = jnp.maximum(x @ params["w1"].T + params["b1"], 0.0) @ params["w2"].T + params["b2"]
    return ln(x + y, params["g2"], params["be2"])


if __name__ == "__main__":
    key = jax.random.PRNGKey(0)
    k_src, k_pos, k_par = jax.random.split(key, 3)
    src = jax.random.normal(k_src, (S, B, D_MODEL), jnp.float32)
    pos = jax.random.normal(k_pos, (S, B, D_MODEL), jnp.float32)
    params = init_params(k_par)

    packed = pack_params(params)   # one-time prep, outside the per-call path

    out = transformer_encoder_layer(src, pos, packed)
    out = jax.block_until_ready(out)

    ref = reference(src, pos, params)
    assert out.shape == (S, B, D_MODEL)
    assert jnp.allclose(out, ref, atol=1e-4, rtol=1e-4), "mismatch vs JAX reference"

    print("KERNEL_OK")
</pallas_src>

<mosaic_0001>
module attributes {stable_mosaic.version = 11 : i64} {
  func.func @encoder_layer_kernel(%arg0: memref<2x8x32xf32, #tpu.memory_space<vmem>>, %arg1: memref<2x8x32xf32, #tpu.memory_space<vmem>>, %arg2: memref<64x64xf32, #tpu.memory_space<vmem>>, %arg3: memref<128x32xf32, #tpu.memory_space<vmem>>, %arg4: memref<6x64xf32, #tpu.memory_space<vmem>>, %arg5: memref<16x32xf32, #tpu.memory_space<vmem>>) attributes {dimension_semantics = [], scalar_prefetch = 0 : i64, scratch_operands = 0 : i64, tpu.core_type = #tpu.core_type<tc>} {
    %c0 = arith.constant 0 : index
    %c0_0 = arith.constant 0 : index
    %c0_1 = arith.constant 0 : index
    %0 = vector.load %arg0[%c0, %c0_0, %c0_1] : memref<2x8x32xf32, #tpu.memory_space<vmem>>, vector<2x8x32xf32>
    %c0_2 = arith.constant 0 : index
    %c0_3 = arith.constant 0 : index
    %c0_4 = arith.constant 0 : index
    %1 = vector.load %arg1[%c0_2, %c0_3, %c0_4] : memref<2x8x32xf32, #tpu.memory_space<vmem>>, vector<2x8x32xf32>
    %2 = arith.addf %0, %1 : vector<2x8x32xf32>
    %3 = vector.shape_cast %2 : vector<2x8x32xf32> to vector<16x32xf32>
    %4 = vector.shape_cast %0 : vector<2x8x32xf32> to vector<16x32xf32>
    %c0_5 = arith.constant 0 : index
    %c0_6 = arith.constant 0 : index
    %5 = vector.load %arg4[%c0_5, %c0_6] : memref<6x64xf32, #tpu.memory_space<vmem>>, vector<6x64xf32>
    %6 = vector.extract_strided_slice %5 {offsets = [0, 0], sizes = [1, 64], strides = [1, 1]} : vector<6x64xf32> to vector<1x64xf32>
    %7 = vector.extract_strided_slice %5 {offsets = [1, 0], sizes = [1, 32], strides = [1, 1]} : vector<6x64xf32> to vector<1x32xf32>
    %8 = vector.extract_strided_slice %5 {offsets = [1, 32], sizes = [1, 32], strides = [1, 1]} : vector<6x64xf32> to vector<1x32xf32>
    %9 = vector.extract_strided_slice %5 {offsets = [2, 0], sizes = [1, 64], strides = [1, 1]} : vector<6x64xf32> to vector<1x64xf32>
    %10 = vector.extract_strided_slice %5 {offsets = [3, 0], sizes = [1, 32], strides = [1, 1]} : vector<6x64xf32> to vector<1x32xf32>
    %11 = vector.extract_strided_slice %5 {offsets = [3, 32], sizes = [1, 32], strides = [1, 1]} : vector<6x64xf32> to vector<1x32xf32>
    %12 = vector.extract_strided_slice %5 {offsets = [4, 0], sizes = [1, 32], strides = [1, 1]} : vector<6x64xf32> to vector<1x32xf32>
    %13 = vector.extract_strided_slice %5 {offsets = [4, 32], sizes = [1, 32], strides = [1, 1]} : vector<6x64xf32> to vector<1x32xf32>
    %14 = vector.extract_strided_slice %5 {offsets = [5, 0], sizes = [1, 32], strides = [1, 1]} : vector<6x64xf32> to vector<1x32xf32>
    %c0_7 = arith.constant 0 : index
    %c0_8 = arith.constant 0 : index
    %15 = vector.load %arg2[%c0_7, %c0_8] : memref<64x64xf32, #tpu.memory_space<vmem>>, vector<32x64xf32>
    %cst = arith.constant dense<0.000000e+00> : vector<16x64xf32>
    %16 = tpu.matmul %3, %15, %cst {dimension_numbers = #tpu.dot_dimension_numbers<[1], [0], [0], [1], [0, 0, 1, 1], [], []>} : vector<16x32xf32>, vector<32x64xf32>, vector<16x64xf32> -> vector<16x64xf32>
    %17 = vector.broadcast %6 : vector<1x64xf32> to vector<16x64xf32>
    %18 = arith.addf %16, %17 : vector<16x64xf32>
    %19 = vector.extract_strided_slice %18 {offsets = [0, 0], sizes = [16, 32], strides = [1, 1]} : vector<16x64xf32> to vector<16x32xf32>
    %cst_9 = arith.constant 0.353553385 : f32
    %20 = vector.broadcast %cst_9 : f32 to vector<16x32xf32>
    %21 = arith.mulf %19, %20 : vector<16x32xf32>
    %22 = vector.extract_strided_slice %18 {offsets = [0, 32], sizes = [16, 32], strides = [1, 1]} : vector<16x64xf32> to vector<16x32xf32>
    %c0_10 = arith.constant 0 : index
    %c0_11 = arith.constant 0 : index
    %23 = vector.load %arg3[%c0_10, %c0_11] : memref<128x32xf32, #tpu.memory_space<vmem>>, vector<32x32xf32>
    %cst_12 = arith.constant dense<0.000000e+00> : vector<16x32xf32>
    %24 = tpu.matmul %4, %23, %cst_12 {dimension_numbers = #tpu.dot_dimension_numbers<[1], [0], [0], [1], [0, 0, 1, 1], [], []>} : vector<16x32xf32>, vector<32x32xf32>, vector<16x32xf32> -> vector<16x32xf32>
    %25 = vector.broadcast %7 : vector<1x32xf32> to vector<16x32xf32>
    %26 = arith.addf %24, %25 : vector<16x32xf32>
    %cst_13 = arith.constant 0.000000e+00 : f32
    %27 = vector.broadcast %cst_13 : f32 to vector<16x32xf32>
    %28 = vector.extract_strided_slice %21 {offsets = [0, 0], sizes = [16, 8], strides = [1, 1]} : vector<16x32xf32> to vector<16x8xf32>
    %29 = vector.shape_cast %28 : vector<16x8xf32> to vector<2x8x8xf32>
    %30 = vector.extract_strided_slice %22 {offsets = [0, 0], sizes = [16, 8], strides = [1, 1]} : vector<16x32xf32> to vector<16x8xf32>
    %31 = vector.shape_cast %30 : vector<16x8xf32> to vector<2x8x8xf32>
    %32 = vector.extract_strided_slice %26 {offsets = [0, 0], sizes = [16, 8], strides = [1, 1]} : vector<16x32xf32> to vector<16x8xf32>
    %33 = vector.shape_cast %32 : vector<16x8xf32> to vector<2x8x8xf32>
    "tpu.trace_start"() <{level = 10 : i32, message = "bqc,bkc->bqk"}> : () -> ()
    %cst_14 = arith.constant dense<0.000000e+00> : vector<2x8x8xf32>
    %34 = tpu.matmul %29, %31, %cst_14 {dimension_numbers = #tpu.dot_dimension_numbers<[2], [2], [1], [1], [0, 0, 0, 1, 1, 1], [0], [0]>} : vector<2x8x8xf32>, vector<2x8x8xf32>, vector<2x8x8xf32> -> vector<2x8x8xf32>
    "tpu.trace_stop"() : () -> ()
    %cst_15 = arith.constant dense<0xFF800000> : vector<2x8xf32>
    %35 = vector.multi_reduction <maximumf>, %34, %cst_15 [2] : vector<2x8x8xf32> to vector<2x8xf32>
    %36 = vector.shape_cast %35 : vector<2x8xf32> to vector<2x8x1xf32>
    %37 = vector.broadcast %36 : vector<2x8x1xf32> to vector<2x8x8xf32>
    %38 = arith.subf %34, %37 : vector<2x8x8xf32>
    %39 = math.exp %38 : vector<2x8x8xf32>
    %cst_16 = arith.constant dense<0.000000e+00> : vector<2x8xf32>
    %40 = vector.multi_reduction <add>, %39, %cst_16 [2] : vector<2x8x8xf32> to vector<2x8xf32>
    %41 = vector.shape_cast %40 : vector<2x8xf32> to vector<2x8x1xf32>
    %42 = vector.broadcast %41 : vector<2x8x1xf32> to vector<2x8x8xf32>
    %43 = arith.divf %39, %42 : vector<2x8x8xf32>
    "tpu.trace_start"() <{level = 10 : i32, message = "bqk,bkc->bqc"}> : () -> ()
    %cst_17 = arith.constant dense<0.000000e+00> : vector<2x8x8xf32>
    %44 = tpu.matmul %43, %33, %cst_17 {dimension_numbers = #tpu.dot_dimension_numbers<[2], [1], [1], [2], [0, 0, 0, 1, 1, 2], [0], [0]>} : vector<2x8x8xf32>, vector<2x8x8xf32>, vector<2x8x8xf32> -> vector<2x8x8xf32>
    "tpu.trace_stop"() : () -> ()
    %c32 = arith.constant 32 : index
    %c0_18 = arith.constant 0 : index
    %45 = vector.load %arg3[%c32, %c0_18] : memref<128x32xf32, #tpu.memory_space<vmem>>, vector<8x32xf32>
    %46 = vector.shape_cast %44 : vector<2x8x8xf32> to vector<16x8xf32>
    %cst_19 = arith.constant dense<0.000000e+00> : vector<16x32xf32>
    %47 = tpu.matmul %46, %45, %cst_19 {dimension_numbers = #tpu.dot_dimension_numbers<[1], [0], [0], [1], [0, 0, 1, 1], [], []>} : vector<16x8xf32>, vector<8x32xf32>, vector<16x32xf32> -> vector<16x32xf32>
    %48 = arith.addf %27, %47 : vector<16x32xf32>
    %49 = vector.extract_strided_slice %21 {offsets = [0, 8], sizes = [16, 8], strides = [1, 1]} : vector<16x32xf32> to vector<16x8xf32>
    %50 = vector.shape_cast %49 : vector<16x8xf32> to vector<2x8x8xf32>
    %51 = vector.extract_strided_slice %22 {offsets = [0, 8], sizes = [16, 8], strides = [1, 1]} : vector<16x32xf32> to vector<16x8xf32>
    %52 = vector.shape_cast %51 : vector<16x8xf32> to vector<2x8x8xf32>
    %53 = vector.extract_strided_slice %26 {offsets = [0, 8], sizes = [16, 8], strides = [1, 1]} : vector<16x32xf32> to vector<16x8xf32>
    %54 = vector.shape_cast %53 : vector<16x8xf32> to vector<2x8x8xf32>
    "tpu.trace_start"() <{level = 10 : i32, message = "bqc,bkc->bqk"}> : () -> ()
    %cst_20 = arith.constant dense<0.000000e+00> : vector<2x8x8xf32>
    %55 = tpu.matmul %50, %52, %cst_20 {dimension_numbers = #tpu.dot_dimension_numbers<[2], [2], [1], [1], [0, 0, 0, 1, 1, 1], [0], [0]>} : vector<2x8x8xf32>, vector<2x8x8xf32>, vector<2x8x8xf32> -> vector<2x8x8xf32>
    "tpu.trace_stop"() : () -> ()
    %cst_21 = arith.constant dense<0xFF800000> : vector<2x8xf32>
    %56 = vector.multi_reduction <maximumf>, %55, %cst_21 [2] : vector<2x8x8xf32> to vector<2x8xf32>
    %57 = vector.shape_cast %56 : vector<2x8xf32> to vector<2x8x1xf32>
    %58 = vector.broadcast %57 : vector<2x8x1xf32> to vector<2x8x8xf32>
    %59 = arith.subf %55, %58 : vector<2x8x8xf32>
    %60 = math.exp %59 : vector<2x8x8xf32>
    %cst_22 = arith.constant dense<0.000000e+00> : vector<2x8xf32>
    %61 = vector.multi_reduction <add>, %60, %cst_22 [2] : vector<2x8x8xf32> to vector<2x8xf32>
    %62 = vector.shape_cast %61 : vector<2x8xf32> to vector<2x8x1xf32>
    %63 = vector.broadcast %62 : vector<2x8x1xf32> to vector<2x8x8xf32>
    %64 = arith.divf %60, %63 : vector<2x8x8xf32>
    "tpu.trace_start"() <{level = 10 : i32, message = "bqk,bkc->bqc"}> : () -> ()
    %cst_23 = arith.constant dense<0.000000e+00> : vector<2x8x8xf32>
    %65 = tpu.matmul %64, %54, %cst_23 {dimension_numbers = #tpu.dot_dimension_numbers<[2], [1], [1], [2], [0, 0, 0, 1, 1, 2], [0], [0]>} : vector<2x8x8xf32>, vector<2x8x8xf32>, vector<2x8x8xf32> -> vector<2x8x8xf32>
    "tpu.trace_stop"() : () -> ()
    %c40 = arith.constant 40 : index
    %c0_24 = arith.constant 0 : index
    %66 = vector.load %arg3[%c40, %c0_24] : memref<128x32xf32, #tpu.memory_space<vmem>>, vector<8x32xf32>
    %67 = vector.shape_cast %65 : vector<2x8x8xf32> to vector<16x8xf32>
    %cst_25 = arith.constant dense<0.000000e+00> : vector<16x32xf32>
    %68 = tpu.matmul %67, %66, %cst_25 {dimension_numbers = #tpu.dot_dimension_numbers<[1], [0], [0], [1], [0, 0, 1, 1], [], []>} : vector<16x8xf32>, vector<8x32xf32>, vector<16x32xf32> -> vector<16x32xf32>
    %69 = arith.addf %48, %68 : vector<16x32xf32>
    %70 = vector.extract_strided_slice %21 {offsets = [0, 16], sizes = [16, 8], strides = [1, 1]} : vector<16x32xf32> to vector<16x8xf32>
    %71 = vector.shape_cast %70 : vector<16x8xf32> to vector<2x8x8xf32>
    %72 = vector.extract_strided_slice %22 {offsets = [0, 16], sizes = [16, 8], strides = [1, 1]} : vector<16x32xf32> to vector<16x8xf32>
    %73 = vector.shape_cast %72 : vector<16x8xf32> to vector<2x8x8xf32>
    %74 = vector.extract_strided_slice %26 {offsets = [0, 16], sizes = [16, 8], strides = [1, 1]} : vector<16x32xf32> to vector<16x8xf32>
    %75 = vector.shape_cast %74 : vector<16x8xf32> to vector<2x8x8xf32>
    "tpu.trace_start"() <{level = 10 : i32, message = "bqc,bkc->bqk"}> : () -> ()
    %cst_26 = arith.constant dense<0.000000e+00> : vector<2x8x8xf32>
    %76 = tpu.matmul %71, %73, %cst_26 {dimension_numbers = #tpu.dot_dimension_numbers<[2], [2], [1], [1], [0, 0, 0, 1, 1, 1], [0], [0]>} : vector<2x8x8xf32>, vector<2x8x8xf32>, vector<2x8x8xf32> -> vector<2x8x8xf32>
    "tpu.trace_stop"() : () -> ()
    %cst_27 = arith.constant dense<0xFF800000> : vector<2x8xf32>
    %77 = vector.multi_reduction <maximumf>, %76, %cst_27 [2] : vector<2x8x8xf32> to vector<2x8xf32>
    %78 = vector.shape_cast %77 : vector<2x8xf32> to vector<2x8x1xf32>
    %79 = vector.broadcast %78 : vector<2x8x1xf32> to vector<2x8x8xf32>
    %80 = arith.subf %76, %79 : vector<2x8x8xf32>
    %81 = math.exp %80 : vector<2x8x8xf32>
    %cst_28 = arith.constant dense<0.000000e+00> : vector<2x8xf32>
    %82 = vector.multi_reduction <add>, %81, %cst_28 [2] : vector<2x8x8xf32> to vector<2x8xf32>
    %83 = vector.shape_cast %82 : vector<2x8xf32> to vector<2x8x1xf32>
    %84 = vector.broadcast %83 : vector<2x8x1xf32> to vector<2x8x8xf32>
    %85 = arith.divf %81, %84 : vector<2x8x8xf32>
    "tpu.trace_start"() <{level = 10 : i32, message = "bqk,bkc->bqc"}> : () -> ()
    %cst_29 = arith.constant dense<0.000000e+00> : vector<2x8x8xf32>
    %86 = tpu.matmul %85, %75, %cst_29 {dimension_numbers = #tpu.dot_dimension_numbers<[2], [1], [1], [2], [0, 0, 0, 1, 1, 2], [0], [0]>} : vector<2x8x8xf32>, vector<2x8x8xf32>, vector<2x8x8xf32> -> vector<2x8x8xf32>
    "tpu.trace_stop"() : () -> ()
    %c48 = arith.constant 48 : index
    %c0_30 = arith.constant 0 : index
    %87 = vector.load %arg3[%c48, %c0_30] : memref<128x32xf32, #tpu.memory_space<vmem>>, vector<8x32xf32>
    %88 = vector.shape_cast %86 : vector<2x8x8xf32> to vector<16x8xf32>
    %cst_31 = arith.constant dense<0.000000e+00> : vector<16x32xf32>
    %89 = tpu.matmul %88, %87, %cst_31 {dimension_numbers = #tpu.dot_dimension_numbers<[1], [0], [0], [1], [0, 0, 1, 1], [], []>} : vector<16x8xf32>, vector<8x32xf32>, vector<16x32xf32> -> vector<16x32xf32>
    %90 = arith.addf %69, %89 : vector<16x32xf32>
    %91 = vector.extract_strided_slice %21 {offsets = [0, 24], sizes = [16, 8], strides = [1, 1]} : vector<16x32xf32> to vector<16x8xf32>
    %92 = vector.shape_cast %91 : vector<16x8xf32> to vector<2x8x8xf32>
    %93 = vector.extract_strided_slice %22 {offsets = [0, 24], sizes = [16, 8], strides = [1, 1]} : vector<16x32xf32> to vector<16x8xf32>
    %94 = vector.shape_cast %93 : vector<16x8xf32> to vector<2x8x8xf32>
    %95 = vector.extract_strided_slice %26 {offsets = [0, 24], sizes = [16, 8], strides = [1, 1]} : vector<16x32xf32> to vector<16x8xf32>
    %96 = vector.shape_cast %95 : vector<16x8xf32> to vector<2x8x8xf32>
    "tpu.trace_start"() <{level = 10 : i32, message = "bqc,bkc->bqk"}> : () -> ()
    %cst_32 = arith.constant dense<0.000000e+00> : vector<2x8x8xf32>
    %97 = tpu.matmul %92, %94, %cst_32 {dimension_numbers = #tpu.dot_dimension_numbers<[2], [2], [1], [1], [0, 0, 0, 1, 1, 1], [0], [0]>} : vector<2x8x8xf32>, vector<2x8x8xf32>, vector<2x8x8xf32> -> vector<2x8x8xf32>
    "tpu.trace_stop"() : () -> ()
    %cst_33 = arith.constant dense<0xFF800000> : vector<2x8xf32>
    %98 = vector.multi_reduction <maximumf>, %97, %cst_33 [2] : vector<2x8x8xf32> to vector<2x8xf32>
    %99 = vector.shape_cast %98 : vector<2x8xf32> to vector<2x8x1xf32>
    %100 = vector.broadcast %99 : vector<2x8x1xf32> to vector<2x8x8xf32>
    %101 = arith.subf %97, %100 : vector<2x8x8xf32>
    %102 = math.exp %101 : vector<2x8x8xf32>
    %cst_34 = arith.constant dense<0.000000e+00> : vector<2x8xf32>
    %103 = vector.multi_reduction <add>, %102, %cst_34 [2] : vector<2x8x8xf32> to vector<2x8xf32>
    %104 = vector.shape_cast %103 : vector<2x8xf32> to vector<2x8x1xf32>
    %105 = vector.broadcast %104 : vector<2x8x1xf32> to vector<2x8x8xf32>
    %106 = arith.divf %102, %105 : vector<2x8x8xf32>
    "tpu.trace_start"() <{level = 10 : i32, message = "bqk,bkc->bqc"}> : () -> ()
    %cst_35 = arith.constant dense<0.000000e+00> : vector<2x8x8xf32>
    %107 = tpu.matmul %106, %96, %cst_35 {dimension_numbers = #tpu.dot_dimension_numbers<[2], [1], [1], [2], [0, 0, 0, 1, 1, 2], [0], [0]>} : vector<2x8x8xf32>, vector<2x8x8xf32>, vector<2x8x8xf32> -> vector<2x8x8xf32>
    "tpu.trace_stop"() : () -> ()
    %c56 = arith.constant 56 : index
    %c0_36 = arith.constant 0 : index
    %108 = vector.load %arg3[%c56, %c0_36] : memref<128x32xf32, #tpu.memory_space<vmem>>, vector<8x32xf32>
    %109 = vector.shape_cast %107 : vector<2x8x8xf32> to vector<16x8xf32>
    %cst_37 = arith.constant dense<0.000000e+00> : vector<16x32xf32>
    %110 = tpu.matmul %109, %108, %cst_37 {dimension_numbers = #tpu.dot_dimension_numbers<[1], [0], [0], [1], [0, 0, 1, 1], [], []>} : vector<16x8xf32>, vector<8x32xf32>, vector<16x32xf32> -> vector<16x32xf32>
    %111 = arith.addf %90, %110 : vector<16x32xf32>
    %112 = vector.broadcast %8 : vector<1x32xf32> to vector<16x32xf32>
    %113 = arith.addf %111, %112 : vector<16x32xf32>
    %114 = arith.addf %4, %113 : vector<16x32xf32>
    %cst_38 = arith.constant dense<0.000000e+00> : vector<16xf32>
    %115 = vector.multi_reduction <add>, %114, %cst_38 [1] : vector<16x32xf32> to vector<16xf32>
    %116 = vector.shape_cast %115 : vector<16xf32> to vector<16x1xf32>
    %cst_39 = arith.constant 3.200000e+01 : f32
    %117 = vector.broadcast %cst_39 : f32 to vector<16x1xf32>
    %118 = arith.divf %116, %117 : vector<16x1xf32>
    %119 = vector.broadcast %118 : vector<16x1xf32> to vector<16x32xf32>
    %120 = arith.subf %114, %119 : vector<16x32xf32>
    %121 = arith.mulf %120, %120 : vector<16x32xf32>
    %cst_40 = arith.constant dense<0.000000e+00> : vector<16xf32>
    %122 = vector.multi_reduction <add>, %121, %cst_40 [1] : vector<16x32xf32> to vector<16xf32>
    %123 = vector.shape_cast %122 : vector<16xf32> to vector<16x1xf32>
    %cst_41 = arith.constant 3.200000e+01 : f32
    %124 = vector.broadcast %cst_41 : f32 to vector<16x1xf32>
    %125 = arith.divf %123, %124 : vector<16x1xf32>
    %cst_42 = arith.constant 9.99999974E-6 : f32
    %126 = vector.broadcast %cst_42 : f32 to vector<16x1xf32>
    %127 = arith.addf %125, %126 : vector<16x1xf32>
    %128 = math.rsqrt %127 : vector<16x1xf32>
    %129 = vector.broadcast %128 : vector<16x1xf32> to vector<16x32xf32>
    %130 = arith.mulf %120, %129 : vector<16x32xf32>
    %131 = vector.broadcast %11 : vector<1x32xf32> to vector<16x32xf32>
    %132 = arith.mulf %130, %131 : vector<16x32xf32>
    %133 = vector.broadcast %12 : vector<1x32xf32> to vector<16x32xf32>
    %134 = arith.addf %132, %133 : vector<16x32xf32>
    %c32_43 = arith.constant 32 : index
    %c0_44 = arith.constant 0 : index
    %135 = vector.load %arg2[%c32_43, %c0_44] : memref<64x64xf32, #tpu.memory_space<vmem>>, vector<32x64xf32>
    %cst_45 = arith.constant dense<0.000000e+00> : vector<16x64xf32>
    %136 = tpu.matmul %134, %135, %cst_45 {dimension_numbers = #tpu.dot_dimension_numbers<[1], [0], [0], [1], [0, 0, 1, 1], [], []>} : vector<16x32xf32>, vector<32x64xf32>, vector<16x64xf32> -> vector<16x64xf32>
    %137 = vector.broadcast %9 : vector<1x64xf32> to vector<16x64xf32>
    %138 = arith.addf %136, %137 : vector<16x64xf32>
    %cst_46 = arith.constant 0.000000e+00 : f32
    %139 = vector.broadcast %cst_46 : f32 to vector<16x64xf32>
    %140 = arith.maximumf %138, %139 : vector<16x64xf32>
    %c64 = arith.constant 64 : index
    %c0_47 = arith.constant 0 : index
    %141 = vector.load %arg3[%c64, %c0_47] : memref<128x32xf32, #tpu.memory_space<vmem>>, vector<64x32xf32>
    %cst_48 = arith.constant dense<0.000000e+00> : vector<16x32xf32>
    %142 = tpu.matmul %140, %141, %cst_48 {dimension_numbers = #tpu.dot_dimension_numbers<[1], [0], [0], [1], [0, 0, 1, 1], [], []>} : vector<16x64xf32>, vector<64x32xf32>, vector<16x32xf32> -> vector<16x32xf32>
    %143 = vector.broadcast %10 : vector<1x32xf32> to vector<16x32xf32>
    %144 = arith.addf %142, %143 : vector<16x32xf32>
    %145 = arith.addf %134, %144 : vector<16x32xf32>
    %cst_49 = arith.constant dense<0.000000e+00> : vector<16xf32>
    %146 = vector.multi_reduction <add>, %145, %cst_49 [1] : vector<16x32xf32> to vector<16xf32>
    %147 = vector.shape_cast %146 : vector<16xf32> to vector<16x1xf32>
    %cst_50 = arith.constant 3.200000e+01 : f32
    %148 = vector.broadcast %cst_50 : f32 to vector<16x1xf32>
    %149 = arith.divf %147, %148 : vector<16x1xf32>
    %150 = vector.broadcast %149 : vector<16x1xf32> to vector<16x32xf32>
    %151 = arith.subf %145, %150 : vector<16x32xf32>
    %152 = arith.mulf %151, %151 : vector<16x32xf32>
    %cst_51 = arith.constant dense<0.000000e+00> : vector<16xf32>
    %153 = vector.multi_reduction <add>, %152, %cst_51 [1] : vector<16x32xf32> to vector<16xf32>
    %154 = vector.shape_cast %153 : vector<16xf32> to vector<16x1xf32>
    %cst_52 = arith.constant 3.200000e+01 : f32
    %155 = vector.broadcast %cst_52 : f32 to vector<16x1xf32>
    %156 = arith.divf %154, %155 : vector<16x1xf32>
    %cst_53 = arith.constant 9.99999974E-6 : f32
    %157 = vector.broadcast %cst_53 : f32 to vector<16x1xf32>
    %158 = arith.addf %156, %157 : vector<16x1xf32>
    %159 = math.rsqrt %158 : vector<16x1xf32>
    %160 = vector.broadcast %159 : vector<16x1xf32> to vector<16x32xf32>
    %161 = arith.mulf %151, %160 : vector<16x32xf32>
    %162 = vector.broadcast %13 : vector<1x32xf32> to vector<16x32xf32>
    %163 = arith.mulf %161, %162 : vector<16x32xf32>
    %164 = vector.broadcast %14 : vector<1x32xf32> to vector<16x32xf32>
    %165 = arith.addf %163, %164 : vector<16x32xf32>
    %c0_54 = arith.constant 0 : index
    %c0_55 = arith.constant 0 : index
    %166 = vector.load %arg5[%c0_54, %c0_55] : memref<16x32xf32, #tpu.memory_space<vmem>>, vector<16x32xf32>
    tpu.vector_store %arg5[%c0_54, %c0_55], %165 {strides = array<i32>} : memref<16x32xf32, #tpu.memory_space<vmem>>, vector<16x32xf32>,
    return
  }
}

</mosaic_0001>

<llo_original>
// kernel: transformer_encoder_layer.1
$region0: #{transformer_encoder_layer.1}
  #allocation0 [shape = 'u32[]', space=smem, size = 0x4, offset = 0x4, fixed_abs, tag = 'smem constant byte address 0x4 - core index']
  #allocation1 [shape = 'u32[144,128]{1,0:T(1,128)}', space=vmem, size = 0x12000, scoped, tag = 'internal scratch']
  %s0 = inlined_call_operand.vmem [shape: f32[2,8,32], index: 0, kind: input, shape index: {}]
  %s1 = inlined_call_operand.vmem [shape: f32[2,8,32], index: 1, kind: input, shape index: {}]
  %s2 = inlined_call_operand.vmem [shape: f32[64,64], index: 2, kind: input, shape index: {}]
  %s3 = inlined_call_operand.vmem [shape: f32[128,32], index: 3, kind: input, shape index: {}]
  %s4 = inlined_call_operand.vmem [shape: f32[6,64], index: 4, kind: input, shape index: {}]
  %s5 = inlined_call_operand.vmem [shape: f32[16,32], index: 5, kind: output, shape index: {}]
  %s6 = sld [smem:[#allocation0]]
  $region30: #{transformer_encoder_layer.1} parent=0
    _
  %s8 = ssub.s32 1, %s6
  %s9 = scalar_select 0, %s8, %s6
  // Predicated region
  $region2: #{transformer_encoder_layer.1} parent=0 // pred_check
    _
  $region3: #{transformer_encoder_layer.1} parent=0 // pred_check_branch
    %11 = sbr.rel (0) target = $region5
  $region4: #{transformer_encoder_layer.1} parent=0 // pred_region
    _
  $region5: #{transformer_encoder_layer.1} parent=0 // pred_fallthru
    _
  // Predicated region
  $region6: #{transformer_encoder_layer.1} parent=0 // pred_check
    _
  $region7: #{transformer_encoder_layer.1} parent=0 // pred_check_branch
    %13 = sbr.rel (0) target = $region9
  $region8: #{transformer_encoder_layer.1} parent=0 // pred_region
    _
  $region9: #{transformer_encoder_layer.1} parent=0 // pred_fallthru
    _
  // Predicated region
  $region10: #{transformer_encoder_layer.1} parent=0 // pred_check
    _
  $region11: #{transformer_encoder_layer.1} parent=0 // pred_check_branch
    %15 = sbr.rel (0) target = $region13
  $region12: #{transformer_encoder_layer.1} parent=0 // pred_region
    _
  $region13: #{transformer_encoder_layer.1} parent=0 // pred_fallthru
    _
  // Predicated region
  $region14: #{transformer_encoder_layer.1} parent=0 // pred_check
    _
  $region15: #{transformer_encoder_layer.1} parent=0 // pred_check_branch
    %17 = sbr.rel (0) target = $region17
  $region16: #{transformer_encoder_layer.1} parent=0 // pred_region
    _
  $region17: #{transformer_encoder_layer.1} parent=0 // pred_fallthru
    _
  // Predicated region
  $region18: #{transformer_encoder_layer.1} parent=0 // pred_check
    _
  $region19: #{transformer_encoder_layer.1} parent=0 // pred_check_branch
    %19 = sbr.rel (0) target = $region21
  $region20: #{transformer_encoder_layer.1} parent=0 // pred_region
    _
  $region21: #{transformer_encoder_layer.1} parent=0 // pred_fallthru
    _
  %v20 = vld [vmem:[%s0] sm:$0xff]
  %v21 = vld [vmem:[%s0 + $0x8] sm:$0xff]
  %v22 = vld [vmem:[%s1] sm:$0xff]
  %v23 = vld [vmem:[%s1 + $0x8] sm:$0xff]
  %v24 = vadd.f32 %v20, %v22
  %v25 = vadd.f32 %v21, %v23
  %v26 = vld [vmem:[%s4] sm:$0x3f]
  %v27 = vld [vmem:[%s2] sm:$0xff]
  %v28 = vld [vmem:[%s2 + $0x8] sm:$0xff]
  %v29 = vld [vmem:[%s2 + $0x10] sm:$0xff]
  %v30 = vld [vmem:[%s2 + $0x18] sm:$0xff]
  %v31 = vlaneseq
  %v32 = vshrl.u32 %v31, 7
  %v33 = vsub.s32 0, %v32
  %v34 = vrot.slane %v26, %v33
  %vm35 = vcmask 261120
  %v37 = vsel %vm35, %v24, 0
  %v40 = vsel %vm35, %v25, 0
  %42 = vmatprep.subr.mxu0 0.0
  %43 = vmatpush1.msra.mxu0 %v27
  %44 = vmatprep.subr.mxu0 0.0
  %45 = vmatpush1.msra.mxu0 %v28
  %46 = vmatprep.subr.mxu0 0.0
  %47 = vmatpush1.msra.mxu0 %v29
  %48 = vmatprep.subr.mxu0 0.0
  %49 = vmatpush1.msra.mxu0 %v30
  %50 = vmatprep.subr.mxu0 0.0
  %51 = vmatpush1.msra.mxu0 0.0
  %52 = vmatprep.subr.mxu0 0.0
  %53 = vmatpush1.msra.mxu0 0.0
  %54 = vmatprep.subr.mxu0 0.0
  %55 = vmatpush1.msra.mxu0 0.0
  %56 = vmatprep.subr.mxu0 0.0
  %57 = vmatpush1.msra.mxu0 0.0
  %58 = vmatprep.subr.mxu0 0.0
  %59 = vmatpush1.msra.mxu0 0.0
  %60 = vmatprep.subr.mxu0 0.0
  %61 = vmatpush1.msra.mxu0 0.0
  %62 = vmatprep.subr.mxu0 0.0
  %63 = vmatpush1.msra.mxu0 0.0
  %64 = vmatprep.subr.mxu0 0.0
  %65 = vmatpush1.msra.mxu0 0.0
  %66 = vmatprep.subr.mxu0 0.0
  %67 = vmatpush1.msra.mxu0 0.0
  %68 = vmatprep.subr.mxu0 0.0
  %69 = vmatpush1.msra.mxu0 0.0
  %70 = vmatprep.subr.mxu0 0.0
  %71 = vmatpush1.msra.mxu0 0.0
  %72 = vmatprep.subr.mxu0 0.0
  %73 = vmatpush1.msra.mxu0 0.0
  %74 = vmatprep.subr.mxu0 0.0
  %75 = vmatpush1.msra.mxu0 0.0
  %76 = vmatprep.subr.mxu0 0.0
  %77 = vmatpush1.msra.mxu0 0.0
  %78 = vmatprep.subr.mxu0 0.0
  %79 = vmatpush1.msra.mxu0 0.0
  %80 = vmatprep.subr.mxu0 0.0
  %81 = vmatpush1.msra.mxu0 0.0
  %82 = vmatprep.subr.mxu0 0.0
  %83 = vmatpush1.msra.mxu0 0.0
  %84 = vmatprep.subr.mxu0 0.0
  %85 = vmatpush1.msra.mxu0 0.0
  %86 = vmatprep.subr.mxu0 0.0
  %87 = vmatpush1.msra.mxu0 0.0
  %88 = vmatprep.subr.mxu0 0.0
  %89 = vmatpush1.msra.mxu0 0.0
  %90 = vmatprep.subr.mxu0 0.0
  %91 = vmatpush1.msra.mxu0 0.0
  %92 = vmatprep.subr.mxu0 0.0
  %93 = vmatpush1.msra.mxu0 0.0
  %94 = vmatprep.subr.mxu0 0.0
  %95 = vmatpush1.msra.mxu0 0.0
  %96 = vmatprep.subr.mxu0 0.0
  %97 = vmatpush1.msra.mxu0 0.0
  %98 = vmatprep.subr.mxu0 0.0
  %99 = vmatpush1.msra.mxu0 0.0
  %100 = vmatprep.subr.mxu0 0.0
  %101 = vmatpush1.msra.mxu0 0.0
  %102 = vmatprep.subr.mxu0 0.0
  %103 = vmatpush1.msra.mxu0 0.0
  %104 = vmatprep.subr.mxu0 0.0
  %105 = vmatpush1.msra.mxu0 0.0
  %106 = vmatprep.mubr.f32.mxu0 0.0
  %107 = vmatmul.mubr.f32.gmra.mrb[0].mxu0 %v37
  %v108 = vpop.f32.mrb[0].mxu0
  %v109 = vadd.f32 %v34, %v108
  %v110 = vpop.f32.mrb[0].mxu0
  %111 = vmatprep.mubr.f32.mxu0 0.0
  %112 = vmatmul.mubr.f32.gmra.mrb[0].mxu0 %v40
  %v113 = vpop.f32.mrb[0].mxu0
  %v114 = vadd.f32 %v34, %v113
  %v115 = vpop.f32.mrb[0].mxu0
  %116 = vdwg.mxu0
  %v117 = vmul.f32 %v109, 0.35355338
  %v118 = vmul.f32 %v114, 0.35355338
  %v119 = vld [vmem:[%s3] sm:$0xff]
  %v120 = vld [vmem:[%s3 + $0x8] sm:$0xff]
  %v121 = vld [vmem:[%s3 + $0x10] sm:$0xff]
  %v122 = vld [vmem:[%s3 + $0x18] sm:$0xff]
  %v123 = vlaneseq
  %v124 = vshrl.u32 %v123, 7
  %v125 = vsub.s32 1, %v124
  %v126 = vrot.slane %v26, %v125
  %v128 = vsel %vm35, %v20, 0
  %v131 = vsel %vm35, %v21, 0
  %133 = vmatprep.subr.mxu0 0.0
  %134 = vmatpush1.msra.mxu0 %v119
  %135 = vmatprep.subr.mxu0 0.0
  %136 = vmatpush1.msra.mxu0 %v120
  %137 = vmatprep.subr.mxu0 0.0
  %138 = vmatpush1.msra.mxu0 %v121
  %139 = vmatprep.subr.mxu0 0.0
  %140 = vmatpush1.msra.mxu0 %v122
  %141 = vmatprep.subr.mxu0 0.0
  %142 = vmatpush1.msra.mxu0 0.0
  %143 = vmatprep.subr.mxu0 0.0
  %144 = vmatpush1.msra.mxu0 0.0
  %145 = vmatprep.subr.mxu0 0.0
  %146 = vmatpush1.msra.mxu0 0.0
  %147 = vmatprep.subr.mxu0 0.0
  %148 = vmatpush1.msra.mxu0 0.0
  %149 = vmatprep.subr.mxu0 0.0
  %150 = vmatpush1.msra.mxu0 0.0
  %151 = vmatprep.subr.mxu0 0.0
  %152 = vmatpush1.msra.mxu0 0.0
  %153 = vmatprep.subr.mxu0 0.0
  %154 = vmatpush1.msra.mxu0 0.0
  %155 = vmatprep.subr.mxu0 0.0
  %156 = vmatpush1.msra.mxu0 0.0
  %157 = vmatprep.subr.mxu0 0.0
  %158 = vmatpush1.msra.mxu0 0.0
  %159 = vmatprep.subr.mxu0 0.0
  %160 = vmatpush1.msra.mxu0 0.0
  %161 = vmatprep.subr.mxu0 0.0
  %162 = vmatpush1.msra.mxu0 0.0
  %163 = vmatprep.subr.mxu0 0.0
  %164 = vmatpush1.msra.mxu0 0.0
  %165 = vmatprep.subr.mxu0 0.0
  %166 = vmatpush1.msra.mxu0 0.0
  %167 = vmatprep.subr.mxu0 0.0
  %168 = vmatpush1.msra.mxu0 0.0
  %169 = vmatprep.subr.mxu0 0.0
  %170 = vmatpush1.msra.mxu0 0.0
  %171 = vmatprep.subr.mxu0 0.0
  %172 = vmatpush1.msra.mxu0 0.0
  %173 = vmatprep.subr.mxu0 0.0
  %174 = vmatpush1.msra.mxu0 0.0
  %175 = vmatprep.subr.mxu0 0.0
  %176 = vmatpush1.msra.mxu0 0.0
  %177 = vmatprep.subr.mxu0 0.0
  %178 = vmatpush1.msra.mxu0 0.0
  %179 = vmatprep.subr.mxu0 0.0
  %180 = vmatpush1.msra.mxu0 0.0
  %181 = vmatprep.subr.mxu0 0.0
  %182 = vmatpush1.msra.mxu0 0.0
  %183 = vmatprep.subr.mxu0 0.0
  %184 = vmatpush1.msra.mxu0 0.0
  %185 = vmatprep.subr.mxu0 0.0
  %186 = vmatpush1.msra.mxu0 0.0
  %187 = vmatprep.subr.mxu0 0.0
  %188 = vmatpush1.msra.mxu0 0.0
  %189 = vmatprep.subr.mxu0 0.0
  %190 = vmatpush1.msra.mxu0 0.0
  %191 = vmatprep.subr.mxu0 0.0
  %192 = vmatpush1.msra.mxu0 0.0
  %193 = vmatprep.subr.mxu0 0.0
  %194 = vmatpush1.msra.mxu0 0.0
  %195 = vmatprep.subr.mxu0 0.0
  %196 = vmatpush1.msra.mxu0 0.0
  %197 = vmatprep.mubr.f32.mxu0 0.0
  %198 = vmatmul.mubr.f32.gmra.mrb[0].mxu0 %v128
  %v199 = vpop.f32.mrb[0].mxu0
  %v200 = vadd.f32 %v126, %v199
  %v201 = vpop.f32.mrb[0].mxu0
  %202 = vmatprep.mubr.f32.mxu0 0.0
  %203 = vmatmul.mubr.f32.gmra.mrb[0].mxu0 %v131
  %v204 = vpop.f32.mrb[0].mxu0
  %v205 = vadd.f32 %v126, %v204
  %v206 = vpop.f32.mrb[0].mxu0
  %207 = vdwg.mxu0
  %209 = vrot.lane.b32.xlu0 %v109, 96
  %v210 = vpop.permute.xlu0 %209
  %vm211 = vcmask 64512
  %v213 = vsel %vm211, %v117, 0
  %v215 = vsel %vm211, %v210, 0
  %217 = vmatprep.subr.mxu0 0.0
  %218 = vmatpush1.xpose.msra.mxu0 %v215
  %219 = vmatprep.subr.mxu0 0.0
  %220 = vmatpush1.xpose.msra.mxu0 0.0
  %221 = vmatprep.subr.mxu0 0.0
  %222 = vmatpush1.xpose.msra.mxu0 0.0
  %223 = vmatprep.subr.mxu0 0.0
  %224 = vmatpush1.xpose.msra.mxu0 0.0
  %225 = vmatprep.subr.mxu0 0.0
  %226 = vmatpush1.xpose.msra.mxu0 0.0
  %227 = vmatprep.subr.mxu0 0.0
  %228 = vmatpush1.xpose.msra.mxu0 0.0
  %229 = vmatprep.subr.mxu0 0.0
  %230 = vmatpush1.xpose.msra.mxu0 0.0
  %231 = vmatprep.subr.mxu0 0.0
  %232 = vmatpush1.xpose.msra.mxu0 0.0
  %233 = vmatprep.subr.mxu0 0.0
  %234 = vmatpush1.xpose.msra.mxu0 0.0
  %235 = vmatprep.subr.mxu0 0.0
  %236 = vmatpush1.xpose.msra.mxu0 0.0
  %237 = vmatprep.subr.mxu0 0.0
  %238 = vmatpush1.xpose.msra.mxu0 0.0
  %239 = vmatprep.subr.mxu0 0.0
  %240 = vmatpush1.xpose.msra.mxu0 0.0
  %241 = vmatprep.subr.mxu0 0.0
  %242 = vmatpush1.xpose.msra.mxu0 0.0
  %243 = vmatprep.subr.mxu0 0.0
  %244 = vmatpush1.xpose.msra.mxu0 0.0
  %245 = vmatprep.subr.mxu0 0.0
  %246 = vmatpush1.xpose.msra.mxu0 0.0
  %247 = vmatprep.subr.mxu0 0.0
  %248 = vmatpush1.xpose.msra.mxu0 0.0
  %249 = vmatprep.subr.mxu0 0.0
  %250 = vmatpush1.xpose.msra.mxu0 0.0
  %251 = vmatprep.subr.mxu0 0.0
  %252 = vmatpush1.xpose.msra.mxu0 0.0
  %253 = vmatprep.subr.mxu0 0.0
  %254 = vmatpush1.xpose.msra.mxu0 0.0
  %255 = vmatprep.subr.mxu0 0.0
  %256 = vmatpush1.xpose.msra.mxu0 0.0
  %257 = vmatprep.subr.mxu0 0.0
  %258 = vmatpush1.xpose.msra.mxu0 0.0
  %259 = vmatprep.subr.mxu0 0.0
  %260 = vmatpush1.xpose.msra.mxu0 0.0
  %261 = vmatprep.subr.mxu0 0.0
  %262 = vmatpush1.xpose.msra.mxu0 0.0
  %263 = vmatprep.subr.mxu0 0.0
  %264 = vmatpush1.xpose.msra.mxu0 0.0
  %265 = vmatprep.subr.mxu0 0.0
  %266 = vmatpush1.xpose.msra.mxu0 0.0
  %267 = vmatprep.subr.mxu0 0.0
  %268 = vmatpush1.xpose.msra.mxu0 0.0
  %269 = vmatprep.subr.mxu0 0.0
  %270 = vmatpush1.xpose.msra.mxu0 0.0
  %271 = vmatprep.subr.mxu0 0.0
  %272 = vmatpush1.xpose.msra.mxu0 0.0
  %273 = vmatprep.subr.mxu0 0.0
  %274 = vmatpush1.xpose.msra.mxu0 0.0
  %275 = vmatprep.subr.mxu0 0.0
  %276 = vmatpush1.xpose.msra.mxu0 0.0
  %277 = vmatprep.subr.mxu0 0.0
  %278 = vmatpush1.xpose.msra.mxu0 0.0
  %279 = vmatprep.subr.mxu0 0.0
  %280 = vmatpush1.xpose.msra.mxu0 0.0
  %281 = vmatprep.mubr.f32.mxu0 0.0
  %282 = vmatmul.mubr.f32.gmra.mrb[0].mxu0 %v213
  %v283 = vpop.f32.mrb[0].mxu0
  %v284 = vadd.f32 0.0, %v283
  %v285 = vpop.f32.mrb[0].mxu0
  %286 = vdwg.mxu0
  %288 = vrot.lane.b32.xlu0 %v114, 96
  %v289 = vpop.permute.xlu0 %288
  %v291 = vsel %vm211, %v118, 0
  %v293 = vsel %vm211, %v289, 0
  %295 = vmatprep.subr.mxu0 0.0
  %296 = vmatpush1.xpose.msra.mxu0 %v293
  %297 = vmatprep.subr.mxu0 0.0
  %298 = vmatpush1.xpose.msra.mxu0 0.0
  %299 = vmatprep.subr.mxu0 0.0
  %300 = vmatpush1.xpose.msra.mxu0 0.0
  %301 = vmatprep.subr.mxu0 0.0
  %302 = vmatpush1.xpose.msra.mxu0 0.0
  %303 = vmatprep.subr.mxu0 0.0
  %304 = vmatpush1.xpose.msra.mxu0 0.0
  %305 = vmatprep.subr.mxu0 0.0
  %306 = vmatpush1.xpose.msra.mxu0 0.0
  %307 = vmatprep.subr.mxu0 0.0
  %308 = vmatpush1.xpose.msra.mxu0 0.0
  %309 = vmatprep.subr.mxu0 0.0
  %310 = vmatpush1.xpose.msra.mxu0 0.0
  %311 = vmatprep.subr.mxu0 0.0
  %312 = vmatpush1.xpose.msra.mxu0 0.0
  %313 = vmatprep.subr.mxu0 0.0
  %314 = vmatpush1.xpose.msra.mxu0 0.0
  %315 = vmatprep.subr.mxu0 0.0
  %316 = vmatpush1.xpose.msra.mxu0 0.0
  %317 = vmatprep.subr.mxu0 0.0
  %318 = vmatpush1.xpose.msra.mxu0 0.0
  %319 = vmatprep.subr.mxu0 0.0
  %320 = vmatpush1.xpose.msra.mxu0 0.0
  %321 = vmatprep.subr.mxu0 0.0
  %322 = vmatpush1.xpose.msra.mxu0 0.0
  %323 = vmatprep.subr.mxu0 0.0
  %324 = vmatpush1.xpose.msra.mxu0 0.0
  %325 = vmatprep.subr.mxu0 0.0
  %326 = vmatpush1.xpose.msra.mxu0 0.0
  %327 = vmatprep.subr.mxu0 0.0
  %328 = vmatpush1.xpose.msra.mxu0 0.0
  %329 = vmatprep.subr.mxu0 0.0
  %330 = vmatpush1.xpose.msra.mxu0 0.0
  %331 = vmatprep.subr.mxu0 0.0
  %332 = vmatpush1.xpose.msra.mxu0 0.0
  %333 = vmatprep.subr.mxu0 0.0
  %334 = vmatpush1.xpose.msra.mxu0 0.0
  %335 = vmatprep.subr.mxu0 0.0
  %336 = vmatpush1.xpose.msra.mxu0 0.0
  %337 = vmatprep.subr.mxu0 0.0
  %338 = vmatpush1.xpose.msra.mxu0 0.0
  %339 = vmatprep.subr.mxu0 0.0
  %340 = vmatpush1.xpose.msra.mxu0 0.0
  %341 = vmatprep.subr.mxu0 0.0
  %342 = vmatpush1.xpose.msra.mxu0 0.0
  %343 = vmatprep.subr.mxu0 0.0
  %344 = vmatpush1.xpose.msra.mxu0 0.0
  %345 = vmatprep.subr.mxu0 0.0
  %346 = vmatpush1.xpose.msra.mxu0 0.0
  %347 = vmatprep.subr.mxu0 0.0
  %348 = vmatpush1.xpose.msra.mxu0 0.0
  %349 = vmatprep.subr.mxu0 0.0
  %350 = vmatpush1.xpose.msra.mxu0 0.0
  %351 = vmatprep.subr.mxu0 0.0
  %352 = vmatpush1.xpose.msra.mxu0 0.0
  %353 = vmatprep.subr.mxu0 0.0
  %354 = vmatpush1.xpose.msra.mxu0 0.0
  %355 = vmatprep.subr.mxu0 0.0
  %356 = vmatpush1.xpose.msra.mxu0 0.0
  %357 = vmatprep.subr.mxu0 0.0
  %358 = vmatpush1.xpose.msra.mxu0 0.0
  %359 = vmatprep.mubr.f32.mxu0 0.0
  %360 = vmatmul.mubr.f32.gmra.mrb[0].mxu0 %v291
  %v361 = vpop.f32.mrb[0].mxu0
  %v362 = vadd.f32 0.0, %v361
  %v363 = vpop.f32.mrb[0].mxu0
  %364 = vdwg.mxu0
  %v365 = vsel %vm211, %v284, -inf
  %366 = vmax.xlane.f32.xlu0 %v365
  %v367 = vpop.xlane.xlu0 %366
  %v368 = vsel %vm211, %v362, -inf
  %369 = vmax.xlane.f32.xlu0 %v368
  %v370 = vpop.xlane.xlu0 %369
  %v371 = vsub.f32 %v284, %v367
  %v372 = vsub.f32 %v362, %v370
  %v373 = vmul.f32 %v371, 1.442695
  %v374 = vpow.pop %v373
  %v375 = vmul.f32 %v372, 1.442695
  %v376 = vpow.pop %v375
  %v377 = vsel %vm211, %v374, 0.0
  %378 = vadd.xlane.f32.xlu0 %v377
  %v379 = vpop.xlane.xlu0 %378
  %v380 = vsel %vm211, %v376, 0.0
  %381 = vadd.xlane.f32.xlu0 %v380
  %v382 = vpop.xlane.xlu0 %381
  %v383 = vrcp.pop %v379
  %v384 = vmul.f32 %v374, %v383
  %v385 = vrcp.pop %v382
  %v386 = vmul.f32 %v376, %v385
  %v388 = vsel %vm211, %v384, 0
  %390 = vmatprep.subr.mxu0 0.0
  %391 = vmatpush1.msra.mxu0 %v200
  %392 = vmatprep.subr.mxu0 0.0
  %393 = vmatpush1.msra.mxu0 0.0
  %394 = vmatprep.subr.mxu0 0.0
  %395 = vmatpush1.msra.mxu0 0.0
  %396 = vmatprep.subr.mxu0 0.0
  %397 = vmatpush1.msra.mxu0 0.0
  %398 = vmatprep.subr.mxu0 0.0
  %399 = vmatpush1.msra.mxu0 0.0
  %400 = vmatprep.subr.mxu0 0.0
  %401 = vmatpush1.msra.mxu0 0.0
  %402 = vmatprep.subr.mxu0 0.0
  %403 = vmatpush1.msra.mxu0 0.0
  %404 = vmatprep.subr.mxu0 0.0
  %405 = vmatpush1.msra.mxu0 0.0
  %406 = vmatprep.subr.mxu0 0.0
  %407 = vmatpush1.msra.mxu0 0.0
  %408 = vmatprep.subr.mxu0 0.0
  %409 = vmatpush1.msra.mxu0 0.0
  %410 = vmatprep.subr.mxu0 0.0
  %411 = vmatpush1.msra.mxu0 0.0
  %412 = vmatprep.subr.mxu0 0.0
  %413 = vmatpush1.msra.mxu0 0.0
  %414 = vmatprep.subr.mxu0 0.0
  %415 = vmatpush1.msra.mxu0 0.0
  %416 = vmatprep.subr.mxu0 0.0
  %417 = vmatpush1.msra.mxu0 0.0
  %418 = vmatprep.subr.mxu0 0.0
  %419 = vmatpush1.msra.mxu0 0.0
  %420 = vmatprep.subr.mxu0 0.0
  %421 = vmatpush1.msra.mxu0 0.0
  %422 = vmatprep.subr.mxu0 0.0
  %423 = vmatpush1.msra.mxu0 0.0
  %424 = vmatprep.subr.mxu0 0.0
  %425 = vmatpush1.msra.mxu0 0.0
  %426 = vmatprep.subr.mxu0 0.0
  %427 = vmatpush1.msra.mxu0 0.0
  %428 = vmatprep.subr.mxu0 0.0
  %429 = vmatpush1.msra.mxu0 0.0
  %430 = vmatprep.subr.mxu0 0.0
  %431 = vmatpush1.msra.mxu0 0.0
  %432 = vmatprep.subr.mxu0 0.0
  %433 = vmatpush1.msra.mxu0 0.0
  %434 = vmatprep.subr.mxu0 0.0
  %435 = vmatpush1.msra.mxu0 0.0
  %436 = vmatprep.subr.mxu0 0.0
  %437 = vmatpush1.msra.mxu0 0.0
  %438 = vmatprep.subr.mxu0 0.0
  %439 = vmatpush1.msra.mxu0 0.0
  %440 = vmatprep.subr.mxu0 0.0
  %441 = vmatpush1.msra.mxu0 0.0
  %442 = vmatprep.subr.mxu0 0.0
  %443 = vmatpush1.msra.mxu0 0.0
  %444 = vmatprep.subr.mxu0 0.0
  %445 = vmatpush1.msra.mxu0 0.0
  %446 = vmatprep.subr.mxu0 0.0
  %447 = vmatpush1.msra.mxu0 0.0
  %448 = vmatprep.subr.mxu0 0.0
  %449 = vmatpush1.msra.mxu0 0.0
  %450 = vmatprep.subr.mxu0 0.0
  %451 = vmatpush1.msra.mxu0 0.0
  %452 = vmatprep.subr.mxu0 0.0
  %453 = vmatpush1.msra.mxu0 0.0
  %454 = vmatprep.mubr.f32.mxu0 0.0
  %455 = vmatmul.mubr.f32.gmra.mrb[0].mxu0 %v388
  %v456 = vpop.f32.mrb[0].mxu0
  %v457 = vadd.f32 0.0, %v456
  %v458 = vpop.f32.mrb[0].mxu0
  %459 = vdwg.mxu0
  %v461 = vsel %vm211, %v386, 0
  %463 = vmatprep.subr.mxu0 0.0
  %464 = vmatpush1.msra.mxu0 %v205
  %465 = vmatprep.subr.mxu0 0.0
  %466 = vmatpush1.msra.mxu0 0.0
  %467 = vmatprep.subr.mxu0 0.0
  %468 = vmatpush1.msra.mxu0 0.0
  %469 = vmatprep.subr.mxu0 0.0
  %470 = vmatpush1.msra.mxu0 0.0
  %471 = vmatprep.subr.mxu0 0.0
  %472 = vmatpush1.msra.mxu0 0.0
  %473 = vmatprep.subr.mxu0 0.0
  %474 = vmatpush1.msra.mxu0 0.0
  %475 = vmatprep.subr.mxu0 0.0
  %476 = vmatpush1.msra.mxu0 0.0
  %477 = vmatprep.subr.mxu0 0.0
  %478 = vmatpush1.msra.mxu0 0.0
  %479 = vmatprep.subr.mxu0 0.0
  %480 = vmatpush1.msra.mxu0 0.0
  %481 = vmatprep.subr.mxu0 0.0
  %482 = vmatpush1.msra.mxu0 0.0
  %483 = vmatprep.subr.mxu0 0.0
  %484 = vmatpush1.msra.mxu0 0.0
  %485 = vmatprep.subr.mxu0 0.0
  %486 = vmatpush1.msra.mxu0 0.0
  %487 = vmatprep.subr.mxu0 0.0
  %488 = vmatpush1.msra.mxu0 0.0
  %489 = vmatprep.subr.mxu0 0.0
  %490 = vmatpush1.msra.mxu0 0.0
  %491 = vmatprep.subr.mxu0 0.0
  %492 = vmatpush1.msra.mxu0 0.0
  %493 = vmatprep.subr.mxu0 0.0
  %494 = vmatpush1.msra.mxu0 0.0
  %495 = vmatprep.subr.mxu0 0.0
  %496 = vmatpush1.msra.mxu0 0.0
  %497 = vmatprep.subr.mxu0 0.0
  %498 = vmatpush1.msra.mxu0 0.0
  %499 = vmatprep.subr.mxu0 0.0
  %500 = vmatpush1.msra.mxu0 0.0
  %501 = vmatprep.subr.mxu0 0.0
  %502 = vmatpush1.msra.mxu0 0.0
  %503 = vmatprep.subr.mxu0 0.0
  %504 = vmatpush1.msra.mxu0 0.0
  %505 = vmatprep.subr.mxu0 0.0
  %506 = vmatpush1.msra.mxu0 0.0
  %507 = vmatprep.subr.mxu0 0.0
  %508 = vmatpush1.msra.mxu0 0.0
  %509 = vmatprep.subr.mxu0 0.0
  %510 = vmatpush1.msra.mxu0 0.0
  %511 = vmatprep.subr.mxu0 0.0
  %512 = vmatpush1.msra.mxu0 0.0
  %513 = vmatprep.subr.mxu0 0.0
  %514 = vmatpush1.msra.mxu0 0.0
  %515 = vmatprep.subr.mxu0 0.0
  %516 = vmatpush1.msra.mxu0 0.0
  %517 = vmatprep.subr.mxu0 0.0
  %518 = vmatpush1.msra.mxu0 0.0
  %519 = vmatprep.subr.mxu0 0.0
  %520 = vmatpush1.msra.mxu0 0.0
  %521 = vmatprep.subr.mxu0 0.0
  %522 = vmatpush1.msra.mxu0 0.0
  %523 = vmatprep.subr.mxu0 0.0
  %524 = vmatpush1.msra.mxu0 0.0
  %525 = vmatprep.subr.mxu0 0.0
  %526 = vmatpush1.msra.mxu0 0.0
  %527 = vmatprep.mubr.f32.mxu0 0.0
  %528 = vmatmul.mubr.f32.gmra.mrb[0].mxu0 %v461
  %v529 = vpop.f32.mrb[0].mxu0
  %v530 = vadd.f32 0.0, %v529
  %v531 = vpop.f32.mrb[0].mxu0
  %532 = vdwg.mxu0
  %v533 = vld [vmem:[%s3 + $0x20] sm:$0xff]
  %534 = vrot.lane.b32.xlu0 %v117, 120
  %v535 = vpop.permute.xlu0 %534
  %536 = vrot.lane.b32.xlu0 %v109, 88
  %v537 = vpop.permute.xlu0 %536
  %v538 = vsel %vm211, %v535, 0
  %v540 = vsel %vm211, %v537, 0
  %542 = vmatprep.subr.mxu0 0.0
  %543 = vmatpush1.xpose.msra.mxu0 %v540
  %544 = vmatprep.subr.mxu0 0.0
  %545 = vmatpush1.xpose.msra.mxu0 0.0
  %546 = vmatprep.subr.mxu0 0.0
  %547 = vmatpush1.xpose.msra.mxu0 0.0
  %548 = vmatprep.subr.mxu0 0.0
  %549 = vmatpush1.xpose.msra.mxu0 0.0
  %550 = vmatprep.subr.mxu0 0.0
  %551 = vmatpush1.xpose.msra.mxu0 0.0
  %552 = vmatprep.subr.mxu0 0.0
  %553 = vmatpush1.xpose.msra.mxu0 0.0
  %554 = vmatprep.subr.mxu0 0.0
  %555 = vmatpush1.xpose.msra.mxu0 0.0
  %556 = vmatprep.subr.mxu0 0.0
  %557 = vmatpush1.xpose.msra.mxu0 0.0
  %558 = vmatprep.subr.mxu0 0.0
  %559 = vmatpush1.xpose.msra.mxu0 0.0
  %560 = vmatprep.subr.mxu0 0.0
  %561 = vmatpush1.xpose.msra.mxu0 0.0
  %562 = vmatprep.subr.mxu0 0.0
  %563 = vmatpush1.xpose.msra.mxu0 0.0
  %564 = vmatprep.subr.mxu0 0.0
  %565 = vmatpush1.xpose.msra.mxu0 0.0
  %566 = vmatprep.subr.mxu0 0.0
  %567 = vmatpush1.xpose.msra.mxu0 0.0
  %568 = vmatprep.subr.mxu0 0.0
  %569 = vmatpush1.xpose.msra.mxu0 0.0
  %570 = vmatprep.subr.mxu0 0.0
  %571 = vmatpush1.xpose.msra.mxu0 0.0
  %572 = vmatprep.subr.mxu0 0.0
  %573 = vmatpush1.xpose.msra.mxu0 0.0
  %574 = vmatprep.subr.mxu0 0.0
  %575 = vmatpush1.xpose.msra.mxu0 0.0
  %576 = vmatprep.subr.mxu0 0.0
  %577 = vmatpush1.xpose.msra.mxu0 0.0
  %578 = vmatprep.subr.mxu0 0.0
  %579 = vmatpush1.xpose.msra.mxu0 0.0
  %580 = vmatprep.subr.mxu0 0.0
  %581 = vmatpush1.xpose.msra.mxu0 0.0
  %582 = vmatprep.subr.mxu0 0.0
  %583 = vmatpush1.xpose.msra.mxu0 0.0
  %584 = vmatprep.subr.mxu0 0.0
  %585 = vmatpush1.xpose.msra.mxu0 0.0
  %586 = vmatprep.subr.mxu0 0.0
  %587 = vmatpush1.xpose.msra.mxu0 0.0
  %588 = vmatprep.subr.mxu0 0.0
  %589 = vmatpush1.xpose.msra.mxu0 0.0
  %590 = vmatprep.subr.mxu0 0.0
  %591 = vmatpush1.xpose.msra.mxu0 0.0
  %592 = vmatprep.subr.mxu0 0.0
  %593 = vmatpush1.xpose.msra.mxu0 0.0
  %594 = vmatprep.subr.mxu0 0.0
  %595 = vmatpush1.xpose.msra.mxu0 0.0
  %596 = vmatprep.subr.mxu0 0.0
  %597 = vmatpush1.xpose.msra.mxu0 0.0
  %598 = vmatprep.subr.mxu0 0.0
  %599 = vmatpush1.xpose.msra.mxu0 0.0
  %600 = vmatprep.subr.mxu0 0.0
  %601 = vmatpush1.xpose.msra.mxu0 0.0
  %602 = vmatprep.subr.mxu0 0.0
  %603 = vmatpush1.xpose.msra.mxu0 0.0
  %604 = vmatprep.subr.mxu0 0.0
  %605 = vmatpush1.xpose.msra.mxu0 0.0
  %606 = vmatprep.mubr.f32.mxu0 0.0
  %607 = vmatmul.mubr.f32.gmra.mrb[0].mxu0 %v538
  %v608 = vpop.f32.mrb[0].mxu0
  %v609 = vadd.f32 0.0, %v608
  %v610 = vpop.f32.mrb[0].mxu0
  %611 = vdwg.mxu0
  %612 = vrot.lane.b32.xlu0 %v118, 120
  %v613 = vpop.permute.xlu0 %612
  %614 = vrot.lane.b32.xlu0 %v114, 88
  %v615 = vpop.permute.xlu0 %614
  %v616 = vsel %vm211, %v613, 0
  %v618 = vsel %vm211, %v615, 0
  %620 = vmatprep.subr.mxu0 0.0
  %621 = vmatpush1.xpose.msra.mxu0 %v618
  %622 = vmatprep.subr.mxu0 0.0
  %623 = vmatpush1.xpose.msra.mxu0 0.0
  %624 = vmatprep.subr.mxu0 0.0
  %625 = vmatpush1.xpose.msra.mxu0 0.0
  %626 = vmatprep.subr.mxu0 0.0
  %627 = vmatpush1.xpose.msra.mxu0 0.0
  %628 = vmatprep.subr.mxu0 0.0
  %629 = vmatpush1.xpose.msra.mxu0 0.0
  %630 = vmatprep.subr.mxu0 0.0
  %631 = vmatpush1.xpose.msra.mxu0 0.0
  %632 = vmatprep.subr.mxu0 0.0
  %633 = vmatpush1.xpose.msra.mxu0 0.0
  %634 = vmatprep.subr.mxu0 0.0
  %635 = vmatpush1.xpose.msra.mxu0 0.0
  %636 = vmatprep.subr.mxu0 0.0
  %637 = vmatpush1.xpose.msra.mxu0 0.0
  %638 = vmatprep.subr.mxu0 0.0
  %639 = vmatpush1.xpose.msra.mxu0 0.0
  %640 = vmatprep.subr.mxu0 0.0
  %641 = vmatpush1.xpose.msra.mxu0 0.0
  %642 = vmatprep.subr.mxu0 0.0
  %643 = vmatpush1.xpose.msra.mxu0 0.0
  %644 = vmatprep.subr.mxu0 0.0
  %645 = vmatpush1.xpose.msra.mxu0 0.0
  %646 = vmatprep.subr.mxu0 0.0
  %647 = vmatpush1.xpose.msra.mxu0 0.0
  %648 = vmatprep.subr.mxu0 0.0
  %649 = vmatpush1.xpose.msra.mxu0 0.0
  %650 = vmatprep.subr.mxu0 0.0
  %651 = vmatpush1.xpose.msra.mxu0 0.0
  %652 = vmatprep.subr.mxu0 0.0
  %653 = vmatpush1.xpose.msra.mxu0 0.0
  %654 = vmatprep.subr.mxu0 0.0
  %655 = vmatpush1.xpose.msra.mxu0 0.0
  %656 = vmatprep.subr.mxu0 0.0
  %657 = vmatpush1.xpose.msra.mxu0 0.0
  %658 = vmatprep.subr.mxu0 0.0
  %659 = vmatpush1.xpose.msra.mxu0 0.0
  %660 = vmatprep.subr.mxu0 0.0
  %661 = vmatpush1.xpose.msra.mxu0 0.0
  %662 = vmatprep.subr.mxu0 0.0
  %663 = vmatpush1.xpose.msra.mxu0 0.0
  %664 = vmatprep.subr.mxu0 0.0
  %665 = vmatpush1.xpose.msra.mxu0 0.0
  %666 = vmatprep.subr.mxu0 0.0
  %667 = vmatpush1.xpose.msra.mxu0 0.0
  %668 = vmatprep.subr.mxu0 0.0
  %669 = vmatpush1.xpose.msra.mxu0 0.0
  %670 = vmatprep.subr.mxu0 0.0
  %671 = vmatpush1.xpose.msra.mxu0 0.0
  %672 = vmatprep.subr.mxu0 0.0
  %673 = vmatpush1.xpose.msra.mxu0 0.0
  %674 = vmatprep.subr.mxu0 0.0
  %675 = vmatpush1.xpose.msra.mxu0 0.0
  %676 = vmatprep.subr.mxu0 0.0
  %677 = vmatpush1.xpose.msra.mxu0 0.0
  %678 = vmatprep.subr.mxu0 0.0
  %679 = vmatpush1.xpose.msra.mxu0 0.0
  %680 = vmatprep.subr.mxu0 0.0
  %681 = vmatpush1.xpose.msra.mxu0 0.0
  %682 = vmatprep.subr.mxu0 0.0
  %683 = vmatpush1.xpose.msra.mxu0 0.0
  %684 = vmatprep.mubr.f32.mxu0 0.0
  %685 = vmatmul.mubr.f32.gmra.mrb[0].mxu0 %v616
  %v686 = vpop.f32.mrb[0].mxu0
  %v687 = vadd.f32 0.0, %v686
  %v688 = vpop.f32.mrb[0].mxu0
  %689 = vdwg.mxu0
  %v690 = vsel %vm211, %v609, -inf
  %691 = vmax.xlane.f32.xlu0 %v690
  %v692 = vpop.xlane.xlu0 %691
  %v693 = vsel %vm211, %v687, -inf
  %694 = vmax.xlane.f32.xlu0 %v693
  %v695 = vpop.xlane.xlu0 %694
  %v696 = vsub.f32 %v609, %v692
  %v697 = vsub.f32 %v687, %v695
  %v698 = vmul.f32 %v696, 1.442695
  %v699 = vpow.pop %v698
  %v700 = vmul.f32 %v697, 1.442695
  %v701 = vpow.pop %v700
  %v702 = vsel %vm211, %v699, 0.0
  %703 = vadd.xlane.f32.xlu0 %v702
  %v704 = vpop.xlane.xlu0 %703
  %v705 = vsel %vm211, %v701, 0.0
  %706 = vadd.xlane.f32.xlu0 %v705
  %v707 = vpop.xlane.xlu0 %706
  %v708 = vrcp.pop %v704
  %v709 = vmul.f32 %v699, %v708
  %v710 = vrcp.pop %v707
  %v711 = vmul.f32 %v701, %v710
  %713 = vrot.lane.b32.xlu0 %v200, 120
  %v714 = vpop.permute.xlu0 %713
  %v717 = vsel %vm211, %v709, 0
  %719 = vmatprep.subr.mxu0 0.0
  %720 = vmatpush1.msra.mxu0 %v714
  %721 = vmatprep.subr.mxu0 0.0
  %722 = vmatpush1.msra.mxu0 0.0
  %723 = vmatprep.subr.mxu0 0.0
  %724 = vmatpush1.msra.mxu0 0.0
  %725 = vmatprep.subr.mxu0 0.0
  %726 = vmatpush1.msra.mxu0 0.0
  %727 = vmatprep.subr.mxu0 0.0
  %728 = vmatpush1.msra.mxu0 0.0
  %729 = vmatprep.subr.mxu0 0.0
  %730 = vmatpush1.msra.mxu0 0.0
  %731 = vmatprep.subr.mxu0 0.0
  %732 = vmatpush1.msra.mxu0 0.0
  %733 = vmatprep.subr.mxu0 0.0
  %734 = vmatpush1.msra.mxu0 0.0
  %735 = vmatprep.subr.mxu0 0.0
  %736 = vmatpush1.msra.mxu0 0.0
  %737 = vmatprep.subr.mxu0 0.0
  %738 = vmatpush1.msra.mxu0 0.0
  %739 = vmatprep.subr.mxu0 0.0
  %740 = vmatpush1.msra.mxu0 0.0
  %741 = vmatprep.subr.mxu0 0.0
  %742 = vmatpush1.msra.mxu0 0.0
  %743 = vmatprep.subr.mxu0 0.0
  %744 = vmatpush1.msra.mxu0 0.0
  %745 = vmatprep.subr.mxu0 0.0
  %746 = vmatpush1.msra.mxu0 0.0
  %747 = vmatprep.subr.mxu0 0.0
  %748 = vmatpush1.msra.mxu0 0.0
  %749 = vmatprep.subr.mxu0 0.0
  %750 = vmatpush1.msra.mxu0 0.0
  %751 = vmatprep.subr.mxu0 0.0
  %752 = vmatpush1.msra.mxu0 0.0
  %753 = vmatprep.subr.mxu0 0.0
  %754 = vmatpush1.msra.mxu0 0.0
  %755 = vmatprep.subr.mxu0 0.0
  %756 = vmatpush1.msra.mxu0 0.0
  %757 = vmatprep.subr.mxu0 0.0
  %758 = vmatpush1.msra.mxu0 0.0
  %759 = vmatprep.subr.mxu0 0.0
  %760 = vmatpush1.msra.mxu0 0.0
  %761 = vmatprep.subr.mxu0 0.0
  %762 = vmatpush1.msra.mxu0 0.0
  %763 = vmatprep.subr.mxu0 0.0
  %764 = vmatpush1.msra.mxu0 0.0
  %765 = vmatprep.subr.mxu0 0.0
  %766 = vmatpush1.msra.mxu0 0.0
  %767 = vmatprep.subr.mxu0 0.0
  %768 = vmatpush1.msra.mxu0 0.0
  %769 = vmatprep.subr.mxu0 0.0
  %770 = vmatpush1.msra.mxu0 0.0
  %771 = vmatprep.subr.mxu0 0.0
  %772 = vmatpush1.msra.mxu0 0.0
  %773 = vmatprep.subr.mxu0 0.0
  %774 = vmatpush1.msra.mxu0 0.0
  %775 = vmatprep.subr.mxu0 0.0
  %776 = vmatpush1.msra.mxu0 0.0
  %777 = vmatprep.subr.mxu0 0.0
  %778 = vmatpush1.msra.mxu0 0.0
  %779 = vmatprep.subr.mxu0 0.0
  %780 = vmatpush1.msra.mxu0 0.0
  %781 = vmatprep.subr.mxu0 0.0
  %782 = vmatpush1.msra.mxu0 0.0
  %783 = vmatprep.mubr.f32.mxu0 0.0
  %784 = vmatmul.mubr.f32.gmra.mrb[0].mxu0 %v717
  %v785 = vpop.f32.mrb[0].mxu0
  %v786 = vadd.f32 0.0, %v785
  %v787 = vpop.f32.mrb[0].mxu0
  %788 = vdwg.mxu0
  %790 = vrot.lane.b32.xlu0 %v205, 120
  %v791 = vpop.permute.xlu0 %790
  %v794 = vsel %vm211, %v711, 0
  %796 = vmatprep.subr.mxu0 0.0
  %797 = vmatpush1.msra.mxu0 %v791
  %798 = vmatprep.subr.mxu0 0.0
  %799 = vmatpush1.msra.mxu0 0.0
  %800 = vmatprep.subr.mxu0 0.0
  %801 = vmatpush1.msra.mxu0 0.0
  %802 = vmatprep.subr.mxu0 0.0
  %803 = vmatpush1.msra.mxu0 0.0
  %804 = vmatprep.subr.mxu0 0.0
  %805 = vmatpush1.msra.mxu0 0.0
  %806 = vmatprep.subr.mxu0 0.0
  %807 = vmatpush1.msra.mxu0 0.0
  %808 = vmatprep.subr.mxu0 0.0
  %809 = vmatpush1.msra.mxu0 0.0
  %810 = vmatprep.subr.mxu0 0.0
  %811 = vmatpush1.msra.mxu0 0.0
  %812 = vmatprep.subr.mxu0 0.0
  %813 = vmatpush1.msra.mxu0 0.0
  %814 = vmatprep.subr.mxu0 0.0
  %815 = vmatpush1.msra.mxu0 0.0
  %816 = vmatprep.subr.mxu0 0.0
  %817 = vmatpush1.msra.mxu0 0.0
  %818 = vmatprep.subr.mxu0 0.0
  %819 = vmatpush1.msra.mxu0 0.0
  %820 = vmatprep.subr.mxu0 0.0
  %821 = vmatpush1.msra.mxu0 0.0
  %822 = vmatprep.subr.mxu0 0.0
  %823 = vmatpush1.msra.mxu0 0.0
  %824 = vmatprep.subr.mxu0 0.0
  %825 = vmatpush1.msra.mxu0 0.0
  %826 = vmatprep.subr.mxu0 0.0
  %827 = vmatpush1.msra.mxu0 0.0
  %828 = vmatprep.subr.mxu0 0.0
  %829 = vmatpush1.msra.mxu0 0.0
  %830 = vmatprep.subr.mxu0 0.0
  %831 = vmatpush1.msra.mxu0 0.0
  %832 = vmatprep.subr.mxu0 0.0
  %833 = vmatpush1.msra.mxu0 0.0
  %834 = vmatprep.subr.mxu0 0.0
  %835 = vmatpush1.msra.mxu0 0.0
  %836 = vmatprep.subr.mxu0 0.0
  %837 = vmatpush1.msra.mxu0 0.0
  %838 = vmatprep.subr.mxu0 0.0
  %839 = vmatpush1.msra.mxu0 0.0
  %840 = vmatprep.subr.mxu0 0.0
  %841 = vmatpush1.msra.mxu0 0.0
  %842 = vmatprep.subr.mxu0 0.0
  %843 = vmatpush1.msra.mxu0 0.0
  %844 = vmatprep.subr.mxu0 0.0
  %845 = vmatpush1.msra.mxu0 0.0
  %846 = vmatprep.subr.mxu0 0.0
  %847 = vmatpush1.msra.mxu0 0.0
  %848 = vmatprep.subr.mxu0 0.0
  %849 = vmatpush1.msra.mxu0 0.0
  %850 = vmatprep.subr.mxu0 0.0
  %851 = vmatpush1.msra.mxu0 0.0
  %852 = vmatprep.subr.mxu0 0.0
  %853 = vmatpush1.msra.mxu0 0.0
  %854 = vmatprep.subr.mxu0 0.0
  %855 = vmatpush1.msra.mxu0 0.0
  %856 = vmatprep.subr.mxu0 0.0
  %857 = vmatpush1.msra.mxu0 0.0
  %858 = vmatprep.subr.mxu0 0.0
  %859 = vmatpush1.msra.mxu0 0.0
  %860 = vmatprep.mubr.f32.mxu0 0.0
  %861 = vmatmul.mubr.f32.gmra.mrb[0].mxu0 %v794
  %v862 = vpop.f32.mrb[0].mxu0
  %v863 = vadd.f32 0.0, %v862
  %v864 = vpop.f32.mrb[0].mxu0
  %865 = vdwg.mxu0
  %v866 = vld [vmem:[%s3 + $0x28] sm:$0xff]
  %v868 = vsel %vm211, %v786, 0
  %v871 = vsel %vm211, %v863, 0
  %873 = vmatprep.subr.mxu0 0.0
  %874 = vmatpush1.msra.mxu0 %v866
  %875 = vmatprep.subr.mxu0 0.0
  %876 = vmatpush1.msra.mxu0 0.0
  %877 = vmatprep.subr.mxu0 0.0
  %878 = vmatpush1.msra.mxu0 0.0
  %879 = vmatprep.subr.mxu0 0.0
  %880 = vmatpush1.msra.mxu0 0.0
  %881 = vmatprep.subr.mxu0 0.0
  %882 = vmatpush1.msra.mxu0 0.0
  %883 = vmatprep.subr.mxu0 0.0
  %884 = vmatpush1.msra.mxu0 0.0
  %885 = vmatprep.subr.mxu0 0.0
  %886 = vmatpush1.msra.mxu0 0.0
  %887 = vmatprep.subr.mxu0 0.0
  %888 = vmatpush1.msra.mxu0 0.0
  %889 = vmatprep.subr.mxu0 0.0
  %890 = vmatpush1.msra.mxu0 0.0
  %891 = vmatprep.subr.mxu0 0.0
  %892 = vmatpush1.msra.mxu0 0.0
  %893 = vmatprep.subr.mxu0 0.0
  %894 = vmatpush1.msra.mxu0 0.0
  %895 = vmatprep.subr.mxu0 0.0
  %896 = vmatpush1.msra.mxu0 0.0
  %897 = vmatprep.subr.mxu0 0.0
  %898 = vmatpush1.msra.mxu0 0.0
  %899 = vmatprep.subr.mxu0 0.0
  %900 = vmatpush1.msra.mxu0 0.0
  %901 = vmatprep.subr.mxu0 0.0
  %902 = vmatpush1.msra.mxu0 0.0
  %903 = vmatprep.subr.mxu0 0.0
  %904 = vmatpush1.msra.mxu0 0.0
  %905 = vmatprep.subr.mxu0 0.0
  %906 = vmatpush1.msra.mxu0 0.0
  %907 = vmatprep.subr.mxu0 0.0
  %908 = vmatpush1.msra.mxu0 0.0
  %909 = vmatprep.subr.mxu0 0.0
  %910 = vmatpush1.msra.mxu0 0.0
  %911 = vmatprep.subr.mxu0 0.0
  %912 = vmatpush1.msra.mxu0 0.0
  %913 = vmatprep.subr.mxu0 0.0
  %914 = vmatpush1.msra.mxu0 0.0
  %915 = vmatprep.subr.mxu0 0.0
  %916 = vmatpush1.msra.mxu0 0.0
  %917 = vmatprep.subr.mxu0 0.0
  %918 = vmatpush1.msra.mxu0 0.0
  %919 = vmatprep.subr.mxu0 0.0
  %920 = vmatpush1.msra.mxu0 0.0
  %921 = vmatprep.subr.mxu0 0.0
  %922 = vmatpush1.msra.mxu0 0.0
  %923 = vmatprep.subr.mxu0 0.0
  %924 = vmatpush1.msra.mxu0 0.0
  %925 = vmatprep.subr.mxu0 0.0
  %926 = vmatpush1.msra.mxu0 0.0
  %927 = vmatprep.subr.mxu0 0.0
  %928 = vmatpush1.msra.mxu0 0.0
  %929 = vmatprep.subr.mxu0 0.0
  %930 = vmatpush1.msra.mxu0 0.0
  %931 = vmatprep.subr.mxu0 0.0
  %932 = vmatpush1.msra.mxu0 0.0
  %933 = vmatprep.subr.mxu0 0.0
  %934 = vmatpush1.msra.mxu0 0.0
  %935 = vmatprep.subr.mxu0 0.0
  %936 = vmatpush1.msra.mxu0 0.0
  %937 = vmatprep.mubr.f32.mxu0 0.0
  %938 = vmatmul.mubr.f32.gmra.mrb[0].mxu0 %v868
  %v939 = vpop.f32.mrb[0].mxu0
  %v940 = vadd.f32 0.0, %v939
  %v941 = vpop.f32.mrb[0].mxu0
  %942 = vmatprep.mubr.f32.mxu0 0.0
  %943 = vmatmul.mubr.f32.gmra.mrb[0].mxu0 %v871
  %v944 = vpop.f32.mrb[0].mxu0
  %v945 = vadd.f32 0.0, %v944
  %v946 = vpop.f32.mrb[0].mxu0
  %947 = vdwg.mxu0
  %v949 = vsel %vm211, %v457, 0
  %v952 = vsel %vm211, %v530, 0
  %954 = vmatprep.subr.mxu0 0.0
  %955 = vmatpush1.msra.mxu0 %v533
  %956 = vmatprep.subr.mxu0 0.0
  %957 = vmatpush1.msra.mxu0 0.0
  %958 = vmatprep.subr.mxu0 0.0
  %959 = vmatpush1.msra.mxu0 0.0
  %960 = vmatprep.subr.mxu0 0.0
  %961 = vmatpush1.msra.mxu0 0.0
  %962 = vmatprep.subr.mxu0 0.0
  %963 = vmatpush1.msra.mxu0 0.0
  %964 = vmatprep.subr.mxu0 0.0
  %965 = vmatpush1.msra.mxu0 0.0
  %966 = vmatprep.subr.mxu0 0.0
  %967 = vmatpush1.msra.mxu0 0.0
  %968 = vmatprep.subr.mxu0 0.0
  %969 = vmatpush1.msra.mxu0 0.0
  %970 = vmatprep.subr.mxu0 0.0
  %971 = vmatpush1.msra.mxu0 0.0
  %972 = vmatprep.subr.mxu0 0.0
  %973 = vmatpush1.msra.mxu0 0.0
  %974 = vmatprep.subr.mxu0 0.0
  %975 = vmatpush1.msra.mxu0 0.0
  %976 = vmatprep.subr.mxu0 0.0
  %977 = vmatpush1.msra.mxu0 0.0
  %978 = vmatprep.subr.mxu0 0.0
  %979 = vmatpush1.msra.mxu0 0.0
  %980 = vmatprep.subr.mxu0 0.0
  %981 = vmatpush1.msra.mxu0 0.0
  %982 = vmatprep.subr.mxu0 0.0
  %983 = vmatpush1.msra.mxu0 0.0
  %984 = vmatprep.subr.mxu0 0.0
  %985 = vmatpush1.msra.mxu0 0.0
  %986 = vmatprep.subr.mxu0 0.0
  %987 = vmatpush1.msra.mxu0 0.0
  %988 = vmatprep.subr.mxu0 0.0
  %989 = vmatpush1.msra.mxu0 0.0
  %990 = vmatprep.subr.mxu0 0.0
  %991 = vmatpush1.msra.mxu0 0.0
  %992 = vmatprep.subr.mxu0 0.0
  %993 = vmatpush1.msra.mxu0 0.0
  %994 = vmatprep.subr.mxu0 0.0
  %995 = vmatpush1.msra.mxu0 0.0
  %996 = vmatprep.subr.mxu0 0.0
  %997 = vmatpush1.msra.mxu0 0.0
  %998 = vmatprep.subr.mxu0 0.0
  %999 = vmatpush1.msra.mxu0 0.0
  %1000 = vmatprep.subr.mxu0 0.0
  %1001 = vmatpush1.msra.mxu0 0.0
  %1002 = vmatprep.subr.mxu0 0.0
  %1003 = vmatpush1.msra.mxu0 0.0
  %1004 = vmatprep.subr.mxu0 0.0
  %1005 = vmatpush1.msra.mxu0 0.0
  %1006 = vmatprep.subr.mxu0 0.0
  %1007 = vmatpush1.msra.mxu0 0.0
  %1008 = vmatprep.subr.mxu0 0.0
  %1009 = vmatpush1.msra.mxu0 0.0
  %1010 = vmatprep.subr.mxu0 0.0
  %1011 = vmatpush1.msra.mxu0 0.0
  %1012 = vmatprep.subr.mxu0 0.0
  %1013 = vmatpush1.msra.mxu0 0.0
  %1014 = vmatprep.subr.mxu0 0.0
  %1015 = vmatpush1.msra.mxu0 0.0
  %1016 = vmatprep.subr.mxu0 0.0
  %1017 = vmatpush1.msra.mxu0 0.0
  %1018 = vmatprep.mubr.f32.mxu0 0.0
  %1019 = vmatmul.mubr.f32.gmra.mrb[0].mxu0 %v949
  %v1020 = vpop.f32.mrb[0].mxu0
  %v1021 = vadd.f32 %v940, %v1020
  %v1022 = vpop.f32.mrb[0].mxu0
  %1023 = vmatprep.mubr.f32.mxu0 0.0
  %1024 = vmatmul.mubr.f32.gmra.mrb[0].mxu0 %v952
  %v1025 = vpop.f32.mrb[0].mxu0
  %v1026 = vadd.f32 %v945, %v1025
  %v1027 = vpop.f32.mrb[0].mxu0
  %1028 = vdwg.mxu0
  %1029 = vrot.lane.b32.xlu0 %v117, 112
  %v1030 = vpop.permute.xlu0 %1029
  %1031 = vrot.lane.b32.xlu0 %v109, 80
  %v1032 = vpop.permute.xlu0 %1031
  %v1033 = vsel %vm211, %v1030, 0
  %v1035 = vsel %vm211, %v1032, 0
  %1037 = vmatprep.subr.mxu0 0.0
  %1038 = vmatpush1.xpose.msra.mxu0 %v1035
  %1039 = vmatprep.subr.mxu0 0.0
  %1040 = vmatpush1.xpose.msra.mxu0 0.0
  %1041 = vmatprep.subr.mxu0 0.0
  %1042 = vmatpush1.xpose.msra.mxu0 0.0
  %1043 = vmatprep.subr.mxu0 0.0
  %1044 = vmatpush1.xpose.msra.mxu0 0.0
  %1045 = vmatprep.subr.mxu0 0.0
  %1046 = vmatpush1.xpose.msra.mxu0 0.0
  %1047 = vmatprep.subr.mxu0 0.0
  %1048 = vmatpush1.xpose.msra.mxu0 0.0
  %1049 = vmatprep.subr.mxu0 0.0
  %1050 = vmatpush1.xpose.msra.mxu0 0.0
  %1051 = vmatprep.subr.mxu0 0.0
  %1052 = vmatpush1.xpose.msra.mxu0 0.0
  %1053 = vmatprep.subr.mxu0 0.0
  %1054 = vmatpush1.xpose.msra.mxu0 0.0
  %1055 = vmatprep.subr.mxu0 0.0
  %1056 = vmatpush1.xpose.msra.mxu0 0.0
  %1057 = vmatprep.subr.mxu0 0.0
  %1058 = vmatpush1.xpose.msra.mxu0 0.0
  %1059 = vmatprep.subr.mxu0 0.0
  %1060 = vmatpush1.xpose.msra.mxu0 0.0
  %1061 = vmatprep.subr.mxu0 0.0
  %1062 = vmatpush1.xpose.msra.mxu0 0.0
  %1063 = vmatprep.subr.mxu0 0.0
  %1064 = vmatpush1.xpose.msra.mxu0 0.0
  %1065 = vmatprep.subr.mxu0 0.0
  %1066 = vmatpush1.xpose.msra.mxu0 0.0
  %1067 = vmatprep.subr.mxu0 0.0
  %1068 = vmatpush1.xpose.msra.mxu0 0.0
  %1069 = vmatprep.subr.mxu0 0.0
  %1070 = vmatpush1.xpose.msra.mxu0 0.0
  %1071 = vmatprep.subr.mxu0 0.0
  %1072 = vmatpush1.xpose.msra.mxu0 0.0
  %1073 = vmatprep.subr.mxu0 0.0
  %1074 = vmatpush1.xpose.msra.mxu0 0.0
  %1075 = vmatprep.subr.mxu0 0.0
  %1076 = vmatpush1.xpose.msra.mxu0 0.0
  %1077 = vmatprep.subr.mxu0 0.0
  %1078 = vmatpush1.xpose.msra.mxu0 0.0
  %1079 = vmatprep.subr.mxu0 0.0
  %1080 = vmatpush1.xpose.msra.mxu0 0.0
  %1081 = vmatprep.subr.mxu0 0.0
  %1082 = vmatpush1.xpose.msra.mxu0 0.0
  %1083 = vmatprep.subr.mxu0 0.0
  %1084 = vmatpush1.xpose.msra.mxu0 0.0
  %1085 = vmatprep.subr.mxu0 0.0
  %1086 = vmatpush1.xpose.msra.mxu0 0.0
  %1087 = vmatprep.subr.mxu0 0.0
  %1088 = vmatpush1.xpose.msra.mxu0 0.0
  %1089 = vmatprep.subr.mxu0 0.0
  %1090 = vmatpush1.xpose.msra.mxu0 0.0
  %1091 = vmatprep.subr.mxu0 0.0
  %1092 = vmatpush1.xpose.msra.mxu0 0.0
  %1093 = vmatprep.subr.mxu0 0.0
  %1094 = vmatpush1.xpose.msra.mxu0 0.0
  %1095 = vmatprep.subr.mxu0 0.0
  %1096 = vmatpush1.xpose.msra.mxu0 0.0
  %1097 = vmatprep.subr.mxu0 0.0
  %1098 = vmatpush1.xpose.msra.mxu0 0.0
  %1099 = vmatprep.subr.mxu0 0.0
  %1100 = vmatpush1.xpose.msra.mxu0 0.0
  %1101 = vmatprep.mubr.f32.mxu0 0.0
  %1102 = vmatmul.mubr.f32.gmra.mrb[0].mxu0 %v1033
  %v1103 = vpop.f32.mrb[0].mxu0
  %v1104 = vadd.f32 0.0, %v1103
  %v1105 = vpop.f32.mrb[0].mxu0
  %1106 = vdwg.mxu0
  %1107 = vrot.lane.b32.xlu0 %v118, 112
  %v1108 = vpop.permute.xlu0 %1107
  %1109 = vrot.lane.b32.xlu0 %v114, 80
  %v1110 = vpop.permute.xlu0 %1109
  %v1111 = vsel %vm211, %v1108, 0
  %v1113 = vsel %vm211, %v1110, 0
  %1115 = vmatprep.subr.mxu0 0.0
  %1116 = vmatpush1.xpose.msra.mxu0 %v1113
  %1117 = vmatprep.subr.mxu0 0.0
  %1118 = vmatpush1.xpose.msra.mxu0 0.0
  %1119 = vmatprep.subr.mxu0 0.0
  %1120 = vmatpush1.xpose.msra.mxu0 0.0
  %1121 = vmatprep.subr.mxu0 0.0
  %1122 = vmatpush1.xpose.msra.mxu0 0.0
  %1123 = vmatprep.subr.mxu0 0.0
  %1124 = vmatpush1.xpose.msra.mxu0 0.0
  %1125 = vmatprep.subr.mxu0 0.0
  %1126 = vmatpush1.xpose.msra.mxu0 0.0
  %1127 = vmatprep.subr.mxu0 0.0
  %1128 = vmatpush1.xpose.msra.mxu0 0.0
  %1129 = vmatprep.subr.mxu0 0.0
  %1130 = vmatpush1.xpose.msra.mxu0 0.0
  %1131 = vmatprep.subr.mxu0 0.0
  %1132 = vmatpush1.xpose.msra.mxu0 0.0
  %1133 = vmatprep.subr.mxu0 0.0
  %1134 = vmatpush1.xpose.msra.mxu0 0.0
  %1135 = vmatprep.subr.mxu0 0.0
  %1136 = vmatpush1.xpose.msra.mxu0 0.0
  %1137 = vmatprep.subr.mxu0 0.0
  %1138 = vmatpush1.xpose.msra.mxu0 0.0
  %1139 = vmatprep.subr.mxu0 0.0
  %1140 = vmatpush1.xpose.msra.mxu0 0.0
  %1141 = vmatprep.subr.mxu0 0.0
  %1142 = vmatpush1.xpose.msra.mxu0 0.0
  %1143 = vmatprep.subr.mxu0 0.0
  %1144 = vmatpush1.xpose.msra.mxu0 0.0
  %1145 = vmatprep.subr.mxu0 0.0
  %1146 = vmatpush1.xpose.msra.mxu0 0.0
  %1147 = vmatprep.subr.mxu0 0.0
  %1148 = vmatpush1.xpose.msra.mxu0 0.0
  %1149 = vmatprep.subr.mxu0 0.0
  %1150 = vmatpush1.xpose.msra.mxu0 0.0
  %1151 = vmatprep.subr.mxu0 0.0
  %1152 = vmatpush1.xpose.msra.mxu0 0.0
  %1153 = vmatprep.subr.mxu0 0.0
  %1154 = vmatpush1.xpose.msra.mxu0 0.0
  %1155 = vmatprep.subr.mxu0 0.0
  %1156 = vmatpush1.xpose.msra.mxu0 0.0
  %1157 = vmatprep.subr.mxu0 0.0
  %1158 = vmatpush1.xpose.msra.mxu0 0.0
  %1159 = vmatprep.subr.mxu0 0.0
  %1160 = vmatpush1.xpose.msra.mxu0 0.0
  %1161 = vmatprep.subr.mxu0 0.0
  %1162 = vmatpush1.xpose.msra.mxu0 0.0
  %1163 = vmatprep.subr.mxu0 0.0
  %1164 = vmatpush1.xpose.msra.mxu0 0.0
  %1165 = vmatprep.subr.mxu0 0.0
  %1166 = vmatpush1.xpose.msra.mxu0 0.0
  %1167 = vmatprep.subr.mxu0 0.0
  %1168 = vmatpush1.xpose.msra.mxu0 0.0
  %1169 = vmatprep.subr.mxu0 0.0
  %1170 = vmatpush1.xpose.msra.mxu0 0.0
  %1171 = vmatprep.subr.mxu0 0.0
  %1172 = vmatpush1.xpose.msra.mxu0 0.0
  %1173 = vmatprep.subr.mxu0 0.0
  %1174 = vmatpush1.xpose.msra.mxu0 0.0
  %1175 = vmatprep.subr.mxu0 0.0
  %1176 = vmatpush1.xpose.msra.mxu0 0.0
  %1177 = vmatprep.subr.mxu0 0.0
  %1178 = vmatpush1.xpose.msra.mxu0 0.0
  %1179 = vmatprep.mubr.f32.mxu0 0.0
  %1180 = vmatmul.mubr.f32.gmra.mrb[0].mxu0 %v1111
  %v1181 = vpop.f32.mrb[0].mxu0
  %v1182 = vadd.f32 0.0, %v1181
  %v1183 = vpop.f32.mrb[0].mxu0
  %1184 = vdwg.mxu0
  %v1185 = vsel %vm211, %v1104, -inf
  %1186 = vmax.xlane.f32.xlu0 %v1185
  %v1187 = vpop.xlane.xlu0 %1186
  %v1188 = vsel %vm211, %v1182, -inf
  %1189 = vmax.xlane.f32.xlu0 %v1188
  %v1190 = vpop.xlane.xlu0 %1189
  %v1191 = vsub.f32 %v1104, %v1187
  %v1192 = vsub.f32 %v1182, %v1190
  %v1193 = vmul.f32 %v1191, 1.442695
  %v1194 = vpow.pop %v1193
  %v1195 = vmul.f32 %v1192, 1.442695
  %v1196 = vpow.pop %v1195
  %v1197 = vsel %vm211, %v1194, 0.0
  %1198 = vadd.xlane.f32.xlu0 %v1197
  %v1199 = vpop.xlane.xlu0 %1198
  %v1200 = vsel %vm211, %v1196, 0.0
  %1201 = vadd.xlane.f32.xlu0 %v1200
  %v1202 = vpop.xlane.xlu0 %1201
  %v1203 = vrcp.pop %v1199
  %v1204 = vmul.f32 %v1194, %v1203
  %v1205 = vrcp.pop %v1202
  %v1206 = vmul.f32 %v1196, %v1205
  %1207 = vrot.lane.b32.xlu0 %v200, 112
  %v1208 = vpop.permute.xlu0 %1207
  %v1211 = vsel %vm211, %v1204, 0
  %1213 = vmatprep.subr.mxu0 0.0
  %1214 = vmatpush1.msra.mxu0 %v1208
  %1215 = vmatprep.subr.mxu0 0.0
  %1216 = vmatpush1.msra.mxu0 0.0
  %1217 = vmatprep.subr.mxu0 0.0
  %1218 = vmatpush1.msra.mxu0 0.0
  %1219 = vmatprep.subr.mxu0 0.0
  %1220 = vmatpush1.msra.mxu0 0.0
  %1221 = vmatprep.subr.mxu0 0.0
  %1222 = vmatpush1.msra.mxu0 0.0
  %1223 = vmatprep.subr.mxu0 0.0
  %1224 = vmatpush1.msra.mxu0 0.0
  %1225 = vmatprep.subr.mxu0 0.0
  %1226 = vmatpush1.msra.mxu0 0.0
  %1227 = vmatprep.subr.mxu0 0.0
  %1228 = vmatpush1.msra.mxu0 0.0
  %1229 = vmatprep.subr.mxu0 0.0
  %1230 = vmatpush1.msra.mxu0 0.0
  %1231 = vmatprep.subr.mxu0 0.0
  %1232 = vmatpush1.msra.mxu0 0.0
  %1233 = vmatprep.subr.mxu0 0.0
  %1234 = vmatpush1.msra.mxu0 0.0
  %1235 = vmatprep.subr.mxu0 0.0
  %1236 = vmatpush1.msra.mxu0 0.0
  %1237 = vmatprep.subr.mxu0 0.0
  %1238 = vmatpush1.msra.mxu0 0.0
  %1239 = vmatprep.subr.mxu0 0.0
  %1240 = vmatpush1.msra.mxu0 0.0
  %1241 = vmatprep.subr.mxu0 0.0
  %1242 = vmatpush1.msra.mxu0 0.0
  %1243 = vmatprep.subr.mxu0 0.0
  %1244 = vmatpush1.msra.mxu0 0.0
  %1245 = vmatprep.subr.mxu0 0.0
  %1246 = vmatpush1.msra.mxu0 0.0
  %1247 = vmatprep.subr.mxu0 0.0
  %1248 = vmatpush1.msra.mxu0 0.0
  %1249 = vmatprep.subr.mxu0 0.0
  %1250 = vmatpush1.msra.mxu0 0.0
  %1251 = vmatprep.subr.mxu0 0.0
  %1252 = vmatpush1.msra.mxu0 0.0
  %1253 = vmatprep.subr.mxu0 0.0
  %1254 = vmatpush1.msra.mxu0 0.0
  %1255 = vmatprep.subr.mxu0 0.0
  %1256 = vmatpush1.msra.mxu0 0.0
  %1257 = vmatprep.subr.mxu0 0.0
  %1258 = vmatpush1.msra.mxu0 0.0
  %1259 = vmatprep.subr.mxu0 0.0
  %1260 = vmatpush1.msra.mxu0 0.0
  %1261 = vmatprep.subr.mxu0 0.0
  %1262 = vmatpush1.msra.mxu0 0.0
  %1263 = vmatprep.subr.mxu0 0.0
  %1264 = vmatpush1.msra.mxu0 0.0
  %1265 = vmatprep.subr.mxu0 0.0
  %1266 = vmatpush1.msra.mxu0 0.0
  %1267 = vmatprep.subr.mxu0 0.0
  %1268 = vmatpush1.msra.mxu0 0.0
  %1269 = vmatprep.subr.mxu0 0.0
  %1270 = vmatpush1.msra.mxu0 0.0
  %1271 = vmatprep.subr.mxu0 0.0
  %1272 = vmatpush1.msra.mxu0 0.0
  %1273 = vmatprep.subr.mxu0 0.0
  %1274 = vmatpush1.msra.mxu0 0.0
  %1275 = vmatprep.subr.mxu0 0.0
  %1276 = vmatpush1.msra.mxu0 0.0
  %1277 = vmatprep.mubr.f32.mxu0 0.0
  %1278 = vmatmul.mubr.f32.gmra.mrb[0].mxu0 %v1211
  %v1279 = vpop.f32.mrb[0].mxu0
  %v1280 = vadd.f32 0.0, %v1279
  %v1281 = vpop.f32.mrb[0].mxu0
  %1282 = vdwg.mxu0
  %1283 = vrot.lane.b32.xlu0 %v205, 112
  %v1284 = vpop.permute.xlu0 %1283
  %v1287 = vsel %vm211, %v1206, 0
  %1289 = vmatprep.subr.mxu0 0.0
  %1290 = vmatpush1.msra.mxu0 %v1284
  %1291 = vmatprep.subr.mxu0 0.0
  %1292 = vmatpush1.msra.mxu0 0.0
  %1293 = vmatprep.subr.mxu0 0.0
  %1294 = vmatpush1.msra.mxu0 0.0
  %1295 = vmatprep.subr.mxu0 0.0
  %1296 = vmatpush1.msra.mxu0 0.0
  %1297 = vmatprep.subr.mxu0 0.0
  %1298 = vmatpush1.msra.mxu0 0.0
  %1299 = vmatprep.subr.mxu0 0.0
  %1300 = vmatpush1.msra.mxu0 0.0
  %1301 = vmatprep.subr.mxu0 0.0
  %1302 = vmatpush1.msra.mxu0 0.0
  %1303 = vmatprep.subr.mxu0 0.0
  %1304 = vmatpush1.msra.mxu0 0.0
  %1305 = vmatprep.subr.mxu0 0.0
  %1306 = vmatpush1.msra.mxu0 0.0
  %1307 = vmatprep.subr.mxu0 0.0
  %1308 = vmatpush1.msra.mxu0 0.0
  %1309 = vmatprep.subr.mxu0 0.0
  %1310 = vmatpush1.msra.mxu0 0.0
  %1311 = vmatprep.subr.mxu0 0.0
  %1312 = vmatpush1.msra.mxu0 0.0
  %1313 = vmatprep.subr.mxu0 0.0
  %1314 = vmatpush1.msra.mxu0 0.0
  %1315 = vmatprep.subr.mxu0 0.0
  %1316 = vmatpush1.msra.mxu0 0.0
  %1317 = vmatprep.subr.mxu0 0.0
  %1318 = vmatpush1.msra.mxu0 0.0
  %1319 = vmatprep.subr.mxu0 0.0
  %1320 = vmatpush1.msra.mxu0 0.0
  %1321 = vmatprep.subr.mxu0 0.0
  %1322 = vmatpush1.msra.mxu0 0.0
  %1323 = vmatprep.subr.mxu0 0.0
  %1324 = vmatpush1.msra.mxu0 0.0
  %1325 = vmatprep.subr.mxu0 0.0
  %1326 = vmatpush1.msra.mxu0 0.0
  %1327 = vmatprep.subr.mxu0 0.0
  %1328 = vmatpush1.msra.mxu0 0.0
  %1329 = vmatprep.subr.mxu0 0.0
  %1330 = vmatpush1.msra.mxu0 0.0
  %1331 = vmatprep.subr.mxu0 0.0
  %1332 = vmatpush1.msra.mxu0 0.0
  %1333 = vmatprep.subr.mxu0 0.0
  %1334 = vmatpush1.msra.mxu0 0.0
  %1335 = vmatprep.subr.mxu0 0.0
  %1336 = vmatpush1.msra.mxu0 0.0
  %1337 = vmatprep.subr.mxu0 0.0
  %1338 = vmatpush1.msra.mxu0 0.0
  %1339 = vmatprep.subr.mxu0 0.0
  %1340 = vmatpush1.msra.mxu0 0.0
  %1341 = vmatprep.subr.mxu0 0.0
  %1342 = vmatpush1.msra.mxu0 0.0
  %1343 = vmatprep.subr.mxu0 0.0
  %1344 = vmatpush1.msra.mxu0 0.0
  %1345 = vmatprep.subr.mxu0 0.0
  %1346 = vmatpush1.msra.mxu0 0.0
  %1347 = vmatprep.subr.mxu0 0.0
  %1348 = vmatpush1.msra.mxu0 0.0
  %1349 = vmatprep.subr.mxu0 0.0
  %1350 = vmatpush1.msra.mxu0 0.0
  %1351 = vmatprep.subr.mxu0 0.0
  %1352 = vmatpush1.msra.mxu0 0.0
  %1353 = vmatprep.mubr.f32.mxu0 0.0
  %1354 = vmatmul.mubr.f32.gmra.mrb[0].mxu0 %v1287
  %v1355 = vpop.f32.mrb[0].mxu0
  %v1356 = vadd.f32 0.0, %v1355
  %v1357 = vpop.f32.mrb[0].mxu0
  %1358 = vdwg.mxu0
  %v1359 = vld [vmem:[%s3 + $0x30] sm:$0xff]
  %v1361 = vsel %vm211, %v1280, 0
  %v1364 = vsel %vm211, %v1356, 0
  %1366 = vmatprep.subr.mxu0 0.0
  %1367 = vmatpush1.msra.mxu0 %v1359
  %1368 = vmatprep.subr.mxu0 0.0
  %1369 = vmatpush1.msra.mxu0 0.0
  %1370 = vmatprep.subr.mxu0 0.0
  %1371 = vmatpush1.msra.mxu0 0.0
  %1372 = vmatprep.subr.mxu0 0.0
  %1373 = vmatpush1.msra.mxu0 0.0
  %1374 = vmatprep.subr.mxu0 0.0
  %1375 = vmatpush1.msra.mxu0 0.0
  %1376 = vmatprep.subr.mxu0 0.0
  %1377 = vmatpush1.msra.mxu0 0.0
  %1378 = vmatprep.subr.mxu0 0.0
  %1379 = vmatpush1.msra.mxu0 0.0
  %1380 = vmatprep.subr.mxu0 0.0
  %1381 = vmatpush1.msra.mxu0 0.0
  %1382 = vmatprep.subr.mxu0 0.0
  %1383 = vmatpush1.msra.mxu0 0.0
  %1384 = vmatprep.subr.mxu0 0.0
  %1385 = vmatpush1.msra.mxu0 0.0
  %1386 = vmatprep.subr.mxu0 0.0
  %1387 = vmatpush1.msra.mxu0 0.0
  %1388 = vmatprep.subr.mxu0 0.0
  %1389 = vmatpush1.msra.mxu0 0.0
  %1390 = vmatprep.subr.mxu0 0.0
  %1391 = vmatpush1.msra.mxu0 0.0
  %1392 = vmatprep.subr.mxu0 0.0
  %1393 = vmatpush1.msra.mxu0 0.0
  %1394 = vmatprep.subr.mxu0 0.0
  %1395 = vmatpush1.msra.mxu0 0.0
  %1396 = vmatprep.subr.mxu0 0.0
  %1397 = vmatpush1.msra.mxu0 0.0
  %1398 = vmatprep.subr.mxu0 0.0
  %1399 = vmatpush1.msra.mxu0 0.0
  %1400 = vmatprep.subr.mxu0 0.0
  %1401 = vmatpush1.msra.mxu0 0.0
  %1402 = vmatprep.subr.mxu0 0.0
  %1403 = vmatpush1.msra.mxu0 0.0
  %1404 = vmatprep.subr.mxu0 0.0
  %1405 = vmatpush1.msra.mxu0 0.0
  %1406 = vmatprep.subr.mxu0 0.0
  %1407 = vmatpush1.msra.mxu0 0.0
  %1408 = vmatprep.subr.mxu0 0.0
  %1409 = vmatpush1.msra.mxu0 0.0
  %1410 = vmatprep.subr.mxu0 0.0
  %1411 = vmatpush1.msra.mxu0 0.0
  %1412 = vmatprep.subr.mxu0 0.0
  %1413 = vmatpush1.msra.mxu0 0.0
  %1414 = vmatprep.subr.mxu0 0.0
  %1415 = vmatpush1.msra.mxu0 0.0
  %1416 = vmatprep.subr.mxu0 0.0
  %1417 = vmatpush1.msra.mxu0 0.0
  %1418 = vmatprep.subr.mxu0 0.0
  %1419 = vmatpush1.msra.mxu0 0.0
  %1420 = vmatprep.subr.mxu0 0.0
  %1421 = vmatpush1.msra.mxu0 0.0
  %1422 = vmatprep.subr.mxu0 0.0
  %1423 = vmatpush1.msra.mxu0 0.0
  %1424 = vmatprep.subr.mxu0 0.0
  %1425 = vmatpush1.msra.mxu0 0.0
  %1426 = vmatprep.subr.mxu0 0.0
  %1427 = vmatpush1.msra.mxu0 0.0
  %1428 = vmatprep.subr.mxu0 0.0
  %1429 = vmatpush1.msra.mxu0 0.0
  %1430 = vmatprep.mubr.f32.mxu0 0.0
  %1431 = vmatmul.mubr.f32.gmra.mrb[0].mxu0 %v1361
  %v1432 = vpop.f32.mrb[0].mxu0
  %v1433 = vadd.f32 0.0, %v1432
  %v1434 = vpop.f32.mrb[0].mxu0
  %1435 = vmatprep.mubr.f32.mxu0 0.0
  %1436 = vmatmul.mubr.f32.gmra.mrb[0].mxu0 %v1364
  %v1437 = vpop.f32.mrb[0].mxu0
  %v1438 = vadd.f32 0.0, %v1437
  %v1439 = vpop.f32.mrb[0].mxu0
  %1440 = vdwg.mxu0
  %v1441 = vadd.f32 %v1021, %v1433
  %v1442 = vadd.f32 %v1026, %v1438
  %1443 = vrot.lane.b32.xlu0 %v117, 104
  %v1444 = vpop.permute.xlu0 %1443
  %1445 = vrot.lane.b32.xlu0 %v109, 72
  %v1446 = vpop.permute.xlu0 %1445
  %v1447 = vsel %vm211, %v1444, 0
  %v1449 = vsel %vm211, %v1446, 0
  %1451 = vmatprep.subr.mxu0 0.0
  %1452 = vmatpush1.xpose.msra.mxu0 %v1449
  %1453 = vmatprep.subr.mxu0 0.0
  %1454 = vmatpush1.xpose.msra.mxu0 0.0
  %1455 = vmatprep.subr.mxu0 0.0
  %1456 = vmatpush1.xpose.msra.mxu0 0.0
  %1457 = vmatprep.subr.mxu0 0.0
  %1458 = vmatpush1.xpose.msra.mxu0 0.0
  %1459 = vmatprep.subr.mxu0 0.0
  %1460 = vmatpush1.xpose.msra.mxu0 0.0
  %1461 = vmatprep.subr.mxu0 0.0
  %1462 = vmatpush1.xpose.msra.mxu0 0.0
  %1463 = vmatprep.subr.mxu0 0.0
  %1464 = vmatpush1.xpose.msra.mxu0 0.0
  %1465 = vmatprep.subr.mxu0 0.0
  %1466 = vmatpush1.xpose.msra.mxu0 0.0
  %1467 = vmatprep.subr.mxu0 0.0
  %1468 = vmatpush1.xpose.msra.mxu0 0.0
  %1469 = vmatprep.subr.mxu0 0.0
  %1470 = vmatpush1.xpose.msra.mxu0 0.0
  %1471 = vmatprep.subr.mxu0 0.0
  %1472 = vmatpush1.xpose.msra.mxu0 0.0
  %1473 = vmatprep.subr.mxu0 0.0
  %1474 = vmatpush1.xpose.msra.mxu0 0.0
  %1475 = vmatprep.subr.mxu0 0.0
  %1476 = vmatpush1.xpose.msra.mxu0 0.0
  %1477 = vmatprep.subr.mxu0 0.0
  %1478 = vmatpush1.xpose.msra.mxu0 0.0
  %1479 = vmatprep.subr.mxu0 0.0
  %1480 = vmatpush1.xpose.msra.mxu0 0.0
  %1481 = vmatprep.subr.mxu0 0.0
  %1482 = vmatpush1.xpose.msra.mxu0 0.0
  %1483 = vmatprep.subr.mxu0 0.0
  %1484 = vmatpush1.xpose.msra.mxu0 0.0
  %1485 = vmatprep.subr.mxu0 0.0
  %1486 = vmatpush1.xpose.msra.mxu0 0.0
  %1487 = vmatprep.subr.mxu0 0.0
  %1488 = vmatpush1.xpose.msra.mxu0 0.0
  %1489 = vmatprep.subr.mxu0 0.0
  %1490 = vmatpush1.xpose.msra.mxu0 0.0
  %1491 = vmatprep.subr.mxu0 0.0
  %1492 = vmatpush1.xpose.msra.mxu0 0.0
  %1493 = vmatprep.subr.mxu0 0.0
  %1494 = vmatpush1.xpose.msra.mxu0 0.0
  %1495 = vmatprep.subr.mxu0 0.0
  %1496 = vmatpush1.xpose.msra.mxu0 0.0
  %1497 = vmatprep.subr.mxu0 0.0
  %1498 = vmatpush1.xpose.msra.mxu0 0.0
  %1499 = vmatprep.subr.mxu0 0.0
  %1500 = vmatpush1.xpose.msra.mxu0 0.0
  %1501 = vmatprep.subr.mxu0 0.0
  %1502 = vmatpush1.xpose.msra.mxu0 0.0
  %1503 = vmatprep.subr.mxu0 0.0
  %1504 = vmatpush1.xpose.msra.mxu0 0.0
  %1505 = vmatprep.subr.mxu0 0.0
  %1506 = vmatpush1.xpose.msra.mxu0 0.0
  %1507 = vmatprep.subr.mxu0 0.0
  %1508 = vmatpush1.xpose.msra.mxu0 0.0
  %1509 = vmatprep.subr.mxu0 0.0
  %1510 = vmatpush1.xpose.msra.mxu0 0.0
  %1511 = vmatprep.subr.mxu0 0.0
  %1512 = vmatpush1.xpose.msra.mxu0 0.0
  %1513 = vmatprep.subr.mxu0 0.0
  %1514 = vmatpush1.xpose.msra.mxu0 0.0
  %1515 = vmatprep.mubr.f32.mxu0 0.0
  %1516 = vmatmul.mubr.f32.gmra.mrb[0].mxu0 %v1447
  %v1517 = vpop.f32.mrb[0].mxu0
  %v1518 = vadd.f32 0.0, %v1517
  %v1519 = vpop.f32.mrb[0].mxu0
  %1520 = vdwg.mxu0
  %1521 = vrot.lane.b32.xlu0 %v118, 104
  %v1522 = vpop.permute.xlu0 %1521
  %1523 = vrot.lane.b32.xlu0 %v114, 72
  %v1524 = vpop.permute.xlu0 %1523
  %v1525 = vsel %vm211, %v1522, 0
  %v1527 = vsel %vm211, %v1524, 0
  %1529 = vmatprep.subr.mxu0 0.0
  %1530 = vmatpush1.xpose.msra.mxu0 %v1527
  %1531 = vmatprep.subr.mxu0 0.0
  %1532 = vmatpush1.xpose.msra.mxu0 0.0
  %1533 = vmatprep.subr.mxu0 0.0
  %1534 = vmatpush1.xpose.msra.mxu0 0.0
  %1535 = vmatprep.subr.mxu0 0.0
  %1536 = vmatpush1.xpose.msra.mxu0 0.0
  %1537 = vmatprep.subr.mxu0 0.0
  %1538 = vmatpush1.xpose.msra.mxu0 0.0
  %1539 = vmatprep.subr.mxu0 0.0
  %1540 = vmatpush1.xpose.msra.mxu0 0.0
  %1541 = vmatprep.subr.mxu0 0.0
  %1542 = vmatpush1.xpose.msra.mxu0 0.0
  %1543 = vmatprep.subr.mxu0 0.0
  %1544 = vmatpush1.xpose.msra.mxu0 0.0
  %1545 = vmatprep.subr.mxu0 0.0
  %1546 = vmatpush1.xpose.msra.mxu0 0.0
  %1547 = vmatprep.subr.mxu0 0.0
  %1548 = vmatpush1.xpose.msra.mxu0 0.0
  %1549 = vmatprep.subr.mxu0 0.0
  %1550 = vmatpush1.xpose.msra.mxu0 0.0
  %1551 = vmatprep.subr.mxu0 0.0
  %1552 = vmatpush1.xpose.msra.mxu0 0.0
  %1553 = vmatprep.subr.mxu0 0.0
  %1554 = vmatpush1.xpose.msra.mxu0 0.0
  %1555 = vmatprep.subr.mxu0 0.0
  %1556 = vmatpush1.xpose.msra.mxu0 0.0
  %1557 = vmatprep.subr.mxu0 0.0
  %1558 = vmatpush1.xpose.msra.mxu0 0.0
  %1559 = vmatprep.subr.mxu0 0.0
  %1560 = vmatpush1.xpose.msra.mxu0 0.0
  %1561 = vmatprep.subr.mxu0 0.0
  %1562 = vmatpush1.xpose.msra.mxu0 0.0
  %1563 = vmatprep.subr.mxu0 0.0
  %1564 = vmatpush1.xpose.msra.mxu0 0.0
  %1565 = vmatprep.subr.mxu0 0.0
  %1566 = vmatpush1.xpose.msra.mxu0 0.0
  %1567 = vmatprep.subr.mxu0 0.0
  %1568 = vmatpush1.xpose.msra.mxu0 0.0
  %1569 = vmatprep.subr.mxu0 0.0
  %1570 = vmatpush1.xpose.msra.mxu0 0.0
  %1571 = vmatprep.subr.mxu0 0.0
  %1572 = vmatpush1.xpose.msra.mxu0 0.0
  %1573 = vmatprep.subr.mxu0 0.0
  %1574 = vmatpush1.xpose.msra.mxu0 0.0
  %1575 = vmatprep.subr.mxu0 0.0
  %1576 = vmatpush1.xpose.msra.mxu0 0.0
  %1577 = vmatprep.subr.mxu0 0.0
  %1578 = vmatpush1.xpose.msra.mxu0 0.0
  %1579 = vmatprep.subr.mxu0 0.0
  %1580 = vmatpush1.xpose.msra.mxu0 0.0
  %1581 = vmatprep.subr.mxu0 0.0
  %1582 = vmatpush1.xpose.msra.mxu0 0.0
  %1583 = vmatprep.subr.mxu0 0.0
  %1584 = vmatpush1.xpose.msra.mxu0 0.0
  %1585 = vmatprep.subr.mxu0 0.0
  %1586 = vmatpush1.xpose.msra.mxu0 0.0
  %1587 = vmatprep.subr.mxu0 0.0
  %1588 = vmatpush1.xpose.msra.mxu0 0.0
  %1589 = vmatprep.subr.mxu0 0.0
  %1590 = vmatpush1.xpose.msra.mxu0 0.0
  %1591 = vmatprep.subr.mxu0 0.0
  %1592 = vmatpush1.xpose.msra.mxu0 0.0
  %1593 = vmatprep.mubr.f32.mxu0 0.0
  %1594 = vmatmul.mubr.f32.gmra.mrb[0].mxu0 %v1525
  %v1595 = vpop.f32.mrb[0].mxu0
  %v1596 = vadd.f32 0.0, %v1595
  %v1597 = vpop.f32.mrb[0].mxu0
  %1598 = vdwg.mxu0
  %v1599 = vsel %vm211, %v1518, -inf
  %1600 = vmax.xlane.f32.xlu0 %v1599
  %v1601 = vpop.xlane.xlu0 %1600
  %v1602 = vsel %vm211, %v1596, -inf
  %1603 = vmax.xlane.f32.xlu0 %v1602
  %v1604 = vpop.xlane.xlu0 %1603
  %v1605 = vsub.f32 %v1518, %v1601
  %v1606 = vsub.f32 %v1596, %v1604
  %v1607 = vmul.f32 %v1605, 1.442695
  %v1608 = vpow.pop %v1607
  %v1609 = vmul.f32 %v1606, 1.442695
  %v1610 = vpow.pop %v1609
  %v1611 = vsel %vm211, %v1608, 0.0
  %1612 = vadd.xlane.f32.xlu0 %v1611
  %v1613 = vpop.xlane.xlu0 %1612
  %v1614 = vsel %vm211, %v1610, 0.0
  %1615 = vadd.xlane.f32.xlu0 %v1614
  %v1616 = vpop.xlane.xlu0 %1615
  %v1617 = vrcp.pop %v1613
  %v1618 = vmul.f32 %v1608, %v1617
  %v1619 = vrcp.pop %v1616
  %v1620 = vmul.f32 %v1610, %v1619
  %1621 = vrot.lane.b32.xlu0 %v200, 104
  %v1622 = vpop.permute.xlu0 %1621
  %v1625 = vsel %vm211, %v1618, 0
  %1627 = vmatprep.subr.mxu0 0.0
  %1628 = vmatpush1.msra.mxu0 %v1622
  %1629 = vmatprep.subr.mxu0 0.0
  %1630 = vmatpush1.msra.mxu0 0.0
  %1631 = vmatprep.subr.mxu0 0.0
  %1632 = vmatpush1.msra.mxu0 0.0
  %1633 = vmatprep.subr.mxu0 0.0
  %1634 = vmatpush1.msra.mxu0 0.0
  %1635 = vmatprep.subr.mxu0 0.0
  %1636 = vmatpush1.msra.mxu0 0.0
  %1637 = vmatprep.subr.mxu0 0.0
  %1638 = vmatpush1.msra.mxu0 0.0
  %1639 = vmatprep.subr.mxu0 0.0
  %1640 = vmatpush1.msra.mxu0 0.0
  %1641 = vmatprep.subr.mxu0 0.0
  %1642 = vmatpush1.msra.mxu0 0.0
  %1643 = vmatprep.subr.mxu0 0.0
  %1644 = vmatpush1.msra.mxu0 0.0
  %1645 = vmatprep.subr.mxu0 0.0
  %1646 = vmatpush1.msra.mxu0 0.0
  %1647 = vmatprep.subr.mxu0 0.0
  %1648 = vmatpush1.msra.mxu0 0.0
  %1649 = vmatprep.subr.mxu0 0.0
  %1650 = vmatpush1.msra.mxu0 0.0
  %1651 = vmatprep.subr.mxu0 0.0
  %1652 = vmatpush1.msra.mxu0 0.0
  %1653 = vmatprep.subr.mxu0 0.0
  %1654 = vmatpush1.msra.mxu0 0.0
  %1655 = vmatprep.subr.mxu0 0.0
  %1656 = vmatpush1.msra.mxu0 0.0
  %1657 = vmatprep.subr.mxu0 0.0
  %1658 = vmatpush1.msra.mxu0 0.0
  %1659 = vmatprep.subr.mxu0 0.0
  %1660 = vmatpush1.msra.mxu0 0.0
  %1661 = vmatprep.subr.mxu0 0.0
  %1662 = vmatpush1.msra.mxu0 0.0
  %1663 = vmatprep.subr.mxu0 0.0
  %1664 = vmatpush1.msra.mxu0 0.0
  %1665 = vmatprep.subr.mxu0 0.0
  %1666 = vmatpush1.msra.mxu0 0.0
  %1667 = vmatprep.subr.mxu0 0.0
  %1668 = vmatpush1.msra.mxu0 0.0
  %1669 = vmatprep.subr.mxu0 0.0
  %1670 = vmatpush1.msra.mxu0 0.0
  %1671 = vmatprep.subr.mxu0 0.0
  %1672 = vmatpush1.msra.mxu0 0.0
  %1673 = vmatprep.subr.mxu0 0.0
  %1674 = vmatpush1.msra.mxu0 0.0
  %1675 = vmatprep.subr.mxu0 0.0
  %1676 = vmatpush1.msra.mxu0 0.0
  %1677 = vmatprep.subr.mxu0 0.0
  %1678 = vmatpush1.msra.mxu0 0.0
  %1679 = vmatprep.subr.mxu0 0.0
  %1680 = vmatpush1.msra.mxu0 0.0
  %1681 = vmatprep.subr.mxu0 0.0
  %1682 = vmatpush1.msra.mxu0 0.0
  %1683 = vmatprep.subr.mxu0 0.0
  %1684 = vmatpush1.msra.mxu0 0.0
  %1685 = vmatprep.subr.mxu0 0.0
  %1686 = vmatpush1.msra.mxu0 0.0
  %1687 = vmatprep.subr.mxu0 0.0
  %1688 = vmatpush1.msra.mxu0 0.0
  %1689 = vmatprep.subr.mxu0 0.0
  %1690 = vmatpush1.msra.mxu0 0.0
  %1691 = vmatprep.mubr.f32.mxu0 0.0
  %1692 = vmatmul.mubr.f32.gmra.mrb[0].mxu0 %v1625
  %v1693 = vpop.f32.mrb[0].mxu0
  %v1694 = vadd.f32 0.0, %v1693
  %v1695 = vpop.f32.mrb[0].mxu0
  %1696 = vdwg.mxu0
  %1697 = vrot.lane.b32.xlu0 %v205, 104
  %v1698 = vpop.permute.xlu0 %1697
  %v1701 = vsel %vm211, %v1620, 0
  %1703 = vmatprep.subr.mxu0 0.0
  %1704 = vmatpush1.msra.mxu0 %v1698
  %1705 = vmatprep.subr.mxu0 0.0
  %1706 = vmatpush1.msra.mxu0 0.0
  %1707 = vmatprep.subr.mxu0 0.0
  %1708 = vmatpush1.msra.mxu0 0.0
  %1709 = vmatprep.subr.mxu0 0.0
  %1710 = vmatpush1.msra.mxu0 0.0
  %1711 = vmatprep.subr.mxu0 0.0
  %1712 = vmatpush1.msra.mxu0 0.0
  %1713 = vmatprep.subr.mxu0 0.0
  %1714 = vmatpush1.msra.mxu0 0.0
  %1715 = vmatprep.subr.mxu0 0.0
  %1716 = vmatpush1.msra.mxu0 0.0
  %1717 = vmatprep.subr.mxu0 0.0
  %1718 = vmatpush1.msra.mxu0 0.0
  %1719 = vmatprep.subr.mxu0 0.0
  %1720 = vmatpush1.msra.mxu0 0.0
  %1721 = vmatprep.subr.mxu0 0.0
  %1722 = vmatpush1.msra.mxu0 0.0
  %1723 = vmatprep.subr.mxu0 0.0
  %1724 = vmatpush1.msra.mxu0 0.0
  %1725 = vmatprep.subr.mxu0 0.0
  %1726 = vmatpush1.msra.mxu0 0.0
  %1727 = vmatprep.subr.mxu0 0.0
  %1728 = vmatpush1.msra.mxu0 0.0
  %1729 = vmatprep.subr.mxu0 0.0
  %1730 = vmatpush1.msra.mxu0 0.0
  %1731 = vmatprep.subr.mxu0 0.0
  %1732 = vmatpush1.msra.mxu0 0.0
  %1733 = vmatprep.subr.mxu0 0.0
  %1734 = vmatpush1.msra.mxu0 0.0
  %1735 = vmatprep.subr.mxu0 0.0
  %1736 = vmatpush1.msra.mxu0 0.0
  %1737 = vmatprep.subr.mxu0 0.0
  %1738 = vmatpush1.msra.mxu0 0.0
  %1739 = vmatprep.subr.mxu0 0.0
  %1740 = vmatpush1.msra.mxu0 0.0
  %1741 = vmatprep.subr.mxu0 0.0
  %1742 = vmatpush1.msra.mxu0 0.0
  %1743 = vmatprep.subr.mxu0 0.0
  %1744 = vmatpush1.msra.mxu0 0.0
  %1745 = vmatprep.subr.mxu0 0.0
  %1746 = vmatpush1.msra.mxu0 0.0
  %1747 = vmatprep.subr.mxu0 0.0
  %1748 = vmatpush1.msra.mxu0 0.0
  %1749 = vmatprep.subr.mxu0 0.0
  %1750 = vmatpush1.msra.mxu0 0.0
  %1751 = vmatprep.subr.mxu0 0.0
  %1752 = vmatpush1.msra.mxu0 0.0
  %1753 = vmatprep.subr.mxu0 0.0
  %1754 = vmatpush1.msra.mxu0 0.0
  %1755 = vmatprep.subr.mxu0 0.0
  %1756 = vmatpush1.msra.mxu0 0.0
  %1757 = vmatprep.subr.mxu0 0.0
  %1758 = vmatpush1.msra.mxu0 0.0
  %1759 = vmatprep.subr.mxu0 0.0
  %1760 = vmatpush1.msra.mxu0 0.0
  %1761 = vmatprep.subr.mxu0 0.0
  %1762 = vmatpush1.msra.mxu0 0.0
  %1763 = vmatprep.subr.mxu0 0.0
  %1764 = vmatpush1.msra.mxu0 0.0
  %1765 = vmatprep.subr.mxu0 0.0
  %1766 = vmatpush1.msra.mxu0 0.0
  %1767 = vmatprep.mubr.f32.mxu0 0.0
  %1768 = vmatmul.mubr.f32.gmra.mrb[0].mxu0 %v1701
  %v1769 = vpop.f32.mrb[0].mxu0
  %v1770 = vadd.f32 0.0, %v1769
  %v1771 = vpop.f32.mrb[0].mxu0
  %1772 = vdwg.mxu0
  %v1773 = vld [vmem:[%s3 + $0x38] sm:$0xff]
  %v1775 = vsel %vm211, %v1694, 0
  %v1778 = vsel %vm211, %v1770, 0
  %1780 = vmatprep.subr.mxu0 0.0
  %1781 = vmatpush1.msra.mxu0 %v1773
  %1782 = vmatprep.subr.mxu0 0.0
  %1783 = vmatpush1.msra.mxu0 0.0
  %1784 = vmatprep.subr.mxu0 0.0
  %1785 = vmatpush1.msra.mxu0 0.0
  %1786 = vmatprep.subr.mxu0 0.0
  %1787 = vmatpush1.msra.mxu0 0.0
  %1788 = vmatprep.subr.mxu0 0.0
  %1789 = vmatpush1.msra.mxu0 0.0
  %1790 = vmatprep.subr.mxu0 0.0
  %1791 = vmatpush1.msra.mxu0 0.0
  %1792 = vmatprep.subr.mxu0 0.0
  %1793 = vmatpush1.msra.mxu0 0.0
  %1794 = vmatprep.subr.mxu0 0.0
  %1795 = vmatpush1.msra.mxu0 0.0
  %1796 = vmatprep.subr.mxu0 0.0
  %1797 = vmatpush1.msra.mxu0 0.0
  %1798 = vmatprep.subr.mxu0 0.0
  %1799 = vmatpush1.msra.mxu0 0.0
  %1800 = vmatprep.subr.mxu0 0.0
  %1801 = vmatpush1.msra.mxu0 0.0
  %1802 = vmatprep.subr.mxu0 0.0
  %1803 = vmatpush1.msra.mxu0 0.0
  %1804 = vmatprep.subr.mxu0 0.0
  %1805 = vmatpush1.msra.mxu0 0.0
  %1806 = vmatprep.subr.mxu0 0.0
  %1807 = vmatpush1.msra.mxu0 0.0
  %1808 = vmatprep.subr.mxu0 0.0
  %1809 = vmatpush1.msra.mxu0 0.0
  %1810 = vmatprep.subr.mxu0 0.0
  %1811 = vmatpush1.msra.mxu0 0.0
  %1812 = vmatprep.subr.mxu0 0.0
  %1813 = vmatpush1.msra.mxu0 0.0
  %1814 = vmatprep.subr.mxu0 0.0
  %1815 = vmatpush1.msra.mxu0 0.0
  %1816 = vmatprep.subr.mxu0 0.0
  %1817 = vmatpush1.msra.mxu0 0.0
  %1818 = vmatprep.subr.mxu0 0.0
  %1819 = vmatpush1.msra.mxu0 0.0
  %1820 = vmatprep.subr.mxu0 0.0
  %1821 = vmatpush1.msra.mxu0 0.0
  %1822 = vmatprep.subr.mxu0 0.0
  %1823 = vmatpush1.msra.mxu0 0.0
  %1824 = vmatprep.subr.mxu0 0.0
  %1825 = vmatpush1.msra.mxu0 0.0
  %1826 = vmatprep.subr.mxu0 0.0
  %1827 = vmatpush1.msra.mxu0 0.0
  %1828 = vmatprep.subr.mxu0 0.0
  %1829 = vmatpush1.msra.mxu0 0.0
  %1830 = vmatprep.subr.mxu0 0.0
  %1831 = vmatpush1.msra.mxu0 0.0
  %1832 = vmatprep.subr.mxu0 0.0
  %1833 = vmatpush1.msra.mxu0 0.0
  %1834 = vmatprep.subr.mxu0 0.0
  %1835 = vmatpush1.msra.mxu0 0.0
  %1836 = vmatprep.subr.mxu0 0.0
  %1837 = vmatpush1.msra.mxu0 0.0
  %1838 = vmatprep.subr.mxu0 0.0
  %1839 = vmatpush1.msra.mxu0 0.0
  %1840 = vmatprep.subr.mxu0 0.0
  %1841 = vmatpush1.msra.mxu0 0.0
  %1842 = vmatprep.subr.mxu0 0.0
  %1843 = vmatpush1.msra.mxu0 0.0
  %1844 = vmatprep.mubr.f32.mxu0 0.0
  %1845 = vmatmul.mubr.f32.gmra.mrb[0].mxu0 %v1775
  %v1846 = vpop.f32.mrb[0].mxu0
  %v1847 = vadd.f32 0.0, %v1846
  %v1848 = vpop.f32.mrb[0].mxu0
  %1849 = vmatprep.mubr.f32.mxu0 0.0
  %1850 = vmatmul.mubr.f32.gmra.mrb[0].mxu0 %v1778
  %v1851 = vpop.f32.mrb[0].mxu0
  %v1852 = vadd.f32 0.0, %v1851
  %v1853 = vpop.f32.mrb[0].mxu0
  %1854 = vdwg.mxu0
  %v1855 = vadd.f32 %v1441, %v1847
  %v1856 = vadd.f32 %v1442, %v1852
  %1858 = vrot.lane.b32.xlu0 %v126, 96
  %v1859 = vpop.permute.xlu0 %1858
  %v1861 = vadd.f32 %v1855, %v1859
  %v1862 = vadd.f32 %v1856, %v1859
  %v1863 = vadd.f32 %v20, %v1861
  %v1864 = vadd.f32 %v21, %v1862
  %v1865 = vsel %vm35, %v1863, 0.0
  %1866 = vadd.xlane.f32.xlu0 %v1865
  %v1867 = vpop.xlane.xlu0 %1866
  %v1868 = vsel %vm35, %v1864, 0.0
  %1869 = vadd.xlane.f32.xlu0 %v1868
  %v1870 = vpop.xlane.xlu0 %1869
  %v1871 = vrcp.pop 32.0
  %v1872 = vmul.f32 %v1867, %v1871
  %v1873 = vmul.f32 %v1870, %v1871
  %v1874 = vsub.f32 %v1863, %v1872
  %v1875 = vsub.f32 %v1864, %v1873
  %v1876 = vmul.f32 %v1874, %v1874
  %v1877 = vmul.f32 %v1875, %v1875
  %v1878 = vsel %vm35, %v1876, 0.0
  %1879 = vadd.xlane.f32.xlu0 %v1878
  %v1880 = vpop.xlane.xlu0 %1879
  %v1881 = vsel %vm35, %v1877, 0.0
  %1882 = vadd.xlane.f32.xlu0 %v1881
  %v1883 = vpop.xlane.xlu0 %1882
  %v1884 = vmul.f32 %v1880, %v1871
  %v1885 = vmul.f32 %v1883, %v1871
  %v1886 = vadd.f32 %v1884, 1e-05
  %v1887 = vadd.f32 %v1885, 1e-05
  %v1888 = vrsqrt.pop %v1886
  %v1889 = vrsqrt.pop %v1887
  %v1890 = vmul.f32 %v1874, %v1888
  %v1891 = vmul.f32 %v1875, %v1889
  %v1892 = vlaneseq
  %v1893 = vshrl.u32 %v1892, 7
  %v1894 = vsub.s32 3, %v1893
  %v1895 = vrot.slane %v26, %v1894
  %1897 = vrot.lane.b32.xlu0 %v1895, 96
  %v1898 = vpop.permute.xlu0 %1897
  %v1900 = vmul.f32 %v1890, %v1898
  %v1901 = vmul.f32 %v1891, %v1898
  %v1902 = vlaneseq
  %v1903 = vshrl.u32 %v1902, 7
  %v1904 = vsub.s32 4, %v1903
  %v1905 = vrot.slane %v26, %v1904
  %v1906 = vadd.f32 %v1900, %v1905
  %v1907 = vadd.f32 %v1901, %v1905
  %v1908 = vld [vmem:[%s2 + $0x20] sm:$0xff]
  %v1909 = vld [vmem:[%s2 + $0x28] sm:$0xff]
  %v1910 = vld [vmem:[%s2 + $0x30] sm:$0xff]
  %v1911 = vld [vmem:[%s2 + $0x38] sm:$0xff]
  %v1912 = vlaneseq
  %v1913 = vshrl.u32 %v1912, 7
  %v1914 = vsub.s32 2, %v1913
  %v1915 = vrot.slane %v26, %v1914
  %v1917 = vsel %vm35, %v1906, 0
  %v1920 = vsel %vm35, %v1907, 0
  %1922 = vmatprep.subr.mxu0 0.0
  %1923 = vmatpush1.msra.mxu0 %v1908
  %1924 = vmatprep.subr.mxu0 0.0
  %1925 = vmatpush1.msra.mxu0 %v1909
  %1926 = vmatprep.subr.mxu0 0.0
  %1927 = vmatpush1.msra.mxu0 %v1910
  %1928 = vmatprep.subr.mxu0 0.0
  %1929 = vmatpush1.msra.mxu0 %v1911
  %1930 = vmatprep.subr.mxu0 0.0
  %1931 = vmatpush1.msra.mxu0 0.0
  %1932 = vmatprep.subr.mxu0 0.0
  %1933 = vmatpush1.msra.mxu0 0.0
  %1934 = vmatprep.subr.mxu0 0.0
  %1935 = vmatpush1.msra.mxu0 0.0
  %1936 = vmatprep.subr.mxu0 0.0
  %1937 = vmatpush1.msra.mxu0 0.0
  %1938 = vmatprep.subr.mxu0 0.0
  %1939 = vmatpush1.msra.mxu0 0.0
  %1940 = vmatprep.subr.mxu0 0.0
  %1941 = vmatpush1.msra.mxu0 0.0
  %1942 = vmatprep.subr.mxu0 0.0
  %1943 = vmatpush1.msra.mxu0 0.0
  %1944 = vmatprep.subr.mxu0 0.0
  %1945 = vmatpush1.msra.mxu0 0.0
  %1946 = vmatprep.subr.mxu0 0.0
  %1947 = vmatpush1.msra.mxu0 0.0
  %1948 = vmatprep.subr.mxu0 0.0
  %1949 = vmatpush1.msra.mxu0 0.0
  %1950 = vmatprep.subr.mxu0 0.0
  %1951 = vmatpush1.msra.mxu0 0.0
  %1952 = vmatprep.subr.mxu0 0.0
  %1953 = vmatpush1.msra.mxu0 0.0
  %1954 = vmatprep.subr.mxu0 0.0
  %1955 = vmatpush1.msra.mxu0 0.0
  %1956 = vmatprep.subr.mxu0 0.0
  %1957 = vmatpush1.msra.mxu0 0.0
  %1958 = vmatprep.subr.mxu0 0.0
  %1959 = vmatpush1.msra.mxu0 0.0
  %1960 = vmatprep.subr.mxu0 0.0
  %1961 = vmatpush1.msra.mxu0 0.0
  %1962 = vmatprep.subr.mxu0 0.0
  %1963 = vmatpush1.msra.mxu0 0.0
  %1964 = vmatprep.subr.mxu0 0.0
  %1965 = vmatpush1.msra.mxu0 0.0
  %1966 = vmatprep.subr.mxu0 0.0
  %1967 = vmatpush1.msra.mxu0 0.0
  %1968 = vmatprep.subr.mxu0 0.0
  %1969 = vmatpush1.msra.mxu0 0.0
  %1970 = vmatprep.subr.mxu0 0.0
  %1971 = vmatpush1.msra.mxu0 0.0
  %1972 = vmatprep.subr.mxu0 0.0
  %1973 = vmatpush1.msra.mxu0 0.0
  %1974 = vmatprep.subr.mxu0 0.0
  %1975 = vmatpush1.msra.mxu0 0.0
  %1976 = vmatprep.subr.mxu0 0.0
  %1977 = vmatpush1.msra.mxu0 0.0
  %1978 = vmatprep.subr.mxu0 0.0
  %1979 = vmatpush1.msra.mxu0 0.0
  %1980 = vmatprep.subr.mxu0 0.0
  %1981 = vmatpush1.msra.mxu0 0.0
  %1982 = vmatprep.subr.mxu0 0.0
  %1983 = vmatpush1.msra.mxu0 0.0
  %1984 = vmatprep.subr.mxu0 0.0
  %1985 = vmatpush1.msra.mxu0 0.0
  %1986 = vmatprep.mubr.f32.mxu0 0.0
  %1987 = vmatmul.mubr.f32.gmra.mrb[0].mxu0 %v1917
  %v1988 = vpop.f32.mrb[0].mxu0
  %v1989 = vadd.f32 %v1915, %v1988
  %v1990 = vpop.f32.mrb[0].mxu0
  %1991 = vmatprep.mubr.f32.mxu0 0.0
  %1992 = vmatmul.mubr.f32.gmra.mrb[0].mxu0 %v1920
  %v1993 = vpop.f32.mrb[0].mxu0
  %v1994 = vadd.f32 %v1915, %v1993
  %v1995 = vpop.f32.mrb[0].mxu0
  %1996 = vdwg.mxu0
  %v1997 = vmax.f32 %v1989, 0.0
  %v1998 = vmax.f32 %v1994, 0.0
  %v1999 = vld [vmem:[%s3 + $0x40] sm:$0xff]
  %v2000 = vld [vmem:[%s3 + $0x48] sm:$0xff]
  %v2001 = vld [vmem:[%s3 + $0x50] sm:$0xff]
  %v2002 = vld [vmem:[%s3 + $0x58] sm:$0xff]
  %v2003 = vld [vmem:[%s3 + $0x60] sm:$0xff]
  %v2004 = vld [vmem:[%s3 + $0x68] sm:$0xff]
  %v2005 = vld [vmem:[%s3 + $0x70] sm:$0xff]
  %v2006 = vld [vmem:[%s3 + $0x78] sm:$0xff]
  %vm2007 = vcmask 523264
  %v2009 = vsel %vm2007, %v1997, 0
  %v2012 = vsel %vm2007, %v1998, 0
  %2014 = vmatprep.subr.mxu0 0.0
  %2015 = vmatpush1.msra.mxu0 %v1999
  %2016 = vmatprep.subr.mxu0 0.0
  %2017 = vmatpush1.msra.mxu0 %v2000
  %2018 = vmatprep.subr.mxu0 0.0
  %2019 = vmatpush1.msra.mxu0 %v2001
  %2020 = vmatprep.subr.mxu0 0.0
  %2021 = vmatpush1.msra.mxu0 %v2002
  %2022 = vmatprep.subr.mxu0 0.0
  %2023 = vmatpush1.msra.mxu0 %v2003
  %2024 = vmatprep.subr.mxu0 0.0
  %2025 = vmatpush1.msra.mxu0 %v2004
  %2026 = vmatprep.subr.mxu0 0.0
  %2027 = vmatpush1.msra.mxu0 %v2005
  %2028 = vmatprep.subr.mxu0 0.0
  %2029 = vmatpush1.msra.mxu0 %v2006
  %2030 = vmatprep.subr.mxu0 0.0
  %2031 = vmatpush1.msra.mxu0 0.0
  %2032 = vmatprep.subr.mxu0 0.0
  %2033 = vmatpush1.msra.mxu0 0.0
  %2034 = vmatprep.subr.mxu0 0.0
  %2035 = vmatpush1.msra.mxu0 0.0
  %2036 = vmatprep.subr.mxu0 0.0
  %2037 = vmatpush1.msra.mxu0 0.0
  %2038 = vmatprep.subr.mxu0 0.0
  %2039 = vmatpush1.msra.mxu0 0.0
  %2040 = vmatprep.subr.mxu0 0.0
  %2041 = vmatpush1.msra.mxu0 0.0
  %2042 = vmatprep.subr.mxu0 0.0
  %2043 = vmatpush1.msra.mxu0 0.0
  %2044 = vmatprep.subr.mxu0 0.0
  %2045 = vmatpush1.msra.mxu0 0.0
  %2046 = vmatprep.subr.mxu0 0.0
  %2047 = vmatpush1.msra.mxu0 0.0
  %2048 = vmatprep.subr.mxu0 0.0
  %2049 = vmatpush1.msra.mxu0 0.0
  %2050 = vmatprep.subr.mxu0 0.0
  %2051 = vmatpush1.msra.mxu0 0.0
  %2052 = vmatprep.subr.mxu0 0.0
  %2053 = vmatpush1.msra.mxu0 0.0
  %2054 = vmatprep.subr.mxu0 0.0
  %2055 = vmatpush1.msra.mxu0 0.0
  %2056 = vmatprep.subr.mxu0 0.0
  %2057 = vmatpush1.msra.mxu0 0.0
  %2058 = vmatprep.subr.mxu0 0.0
  %2059 = vmatpush1.msra.mxu0 0.0
  %2060 = vmatprep.subr.mxu0 0.0
  %2061 = vmatpush1.msra.mxu0 0.0
  %2062 = vmatprep.subr.mxu0 0.0
  %2063 = vmatpush1.msra.mxu0 0.0
  %2064 = vmatprep.subr.mxu0 0.0
  %2065 = vmatpush1.msra.mxu0 0.0
  %2066 = vmatprep.subr.mxu0 0.0
  %2067 = vmatpush1.msra.mxu0 0.0
  %2068 = vmatprep.subr.mxu0 0.0
  %2069 = vmatpush1.msra.mxu0 0.0
  %2070 = vmatprep.subr.mxu0 0.0
  %2071 = vmatpush1.msra.mxu0 0.0
  %2072 = vmatprep.subr.mxu0 0.0
  %2073 = vmatpush1.msra.mxu0 0.0
  %2074 = vmatprep.subr.mxu0 0.0
  %2075 = vmatpush1.msra.mxu0 0.0
  %2076 = vmatprep.subr.mxu0 0.0
  %2077 = vmatpush1.msra.mxu0 0.0
  %2078 = vmatprep.mubr.f32.mxu0 0.0
  %2079 = vmatmul.mubr.f32.gmra.mrb[0].mxu0 %v2009
  %v2080 = vpop.f32.mrb[0].mxu0
  %v2081 = vadd.f32 %v1895, %v2080
  %v2082 = vpop.f32.mrb[0].mxu0
  %2083 = vmatprep.mubr.f32.mxu0 0.0
  %2084 = vmatmul.mubr.f32.gmra.mrb[0].mxu0 %v2012
  %v2085 = vpop.f32.mrb[0].mxu0
  %v2086 = vadd.f32 %v1895, %v2085
  %v2087 = vpop.f32.mrb[0].mxu0
  %2088 = vdwg.mxu0
  %v2089 = vadd.f32 %v1906, %v2081
  %v2090 = vadd.f32 %v1907, %v2086
  %v2091 = vsel %vm35, %v2089, 0.0
  %2092 = vadd.xlane.f32.xlu0 %v2091
  %v2093 = vpop.xlane.xlu0 %2092
  %v2094 = vsel %vm35, %v2090, 0.0
  %2095 = vadd.xlane.f32.xlu0 %v2094
  %v2096 = vpop.xlane.xlu0 %2095
  %v2097 = vmul.f32 %v2093, %v1871
  %v2098 = vmul.f32 %v2096, %v1871
  %v2099 = vsub.f32 %v2089, %v2097
  %v2100 = vsub.f32 %v2090, %v2098
  %v2101 = vmul.f32 %v2099, %v2099
  %v2102 = vmul.f32 %v2100, %v2100
  %v2103 = vsel %vm35, %v2101, 0.0
  %2104 = vadd.xlane.f32.xlu0 %v2103
  %v2105 = vpop.xlane.xlu0 %2104
  %v2106 = vsel %vm35, %v2102, 0.0
  %2107 = vadd.xlane.f32.xlu0 %v2106
  %v2108 = vpop.xlane.xlu0 %2107
  %v2109 = vmul.f32 %v2105, %v1871
  %v2110 = vmul.f32 %v2108, %v1871
  %v2111 = vadd.f32 %v2109, 1e-05
  %v2112 = vadd.f32 %v2110, 1e-05
  %v2113 = vrsqrt.pop %v2111
  %v2114 = vrsqrt.pop %v2112
  %v2115 = vmul.f32 %v2099, %v2113
  %v2116 = vmul.f32 %v2100, %v2114
  %2118 = vrot.lane.b32.xlu0 %v1905, 96
  %v2119 = vpop.permute.xlu0 %2118
  %v2121 = vmul.f32 %v2115, %v2119
  %v2122 = vmul.f32 %v2116, %v2119
  %v2123 = vlaneseq
  %v2124 = vshrl.u32 %v2123, 7
  %v2125 = vsub.s32 5, %v2124
  %v2126 = vrot.slane %v26, %v2125
  %v2127 = vadd.f32 %v2121, %v2126
  %v2128 = vadd.f32 %v2122, %v2126
  %2129 = vst.msk [vmem:[%s5] sm:$0xff] %vm35, %v2127
  %2130 = vst.msk [vmem:[%s5 + $0x8] sm:$0xff] %vm35, %v2128
  // Predicated region
  $region22: #{transformer_encoder_layer.1} parent=0 // pred_check
    _
  $region23: #{transformer_encoder_layer.1} parent=0 // pred_check_branch
    %2132 = sbr.rel (0) target = $region25
  $region24: #{transformer_encoder_layer.1} parent=0 // pred_region
    _
  $region25: #{transformer_encoder_layer.1} parent=0 // pred_fallthru
    _
  // Predicated region
  $region26: #{transformer_encoder_layer.1} parent=0 // pred_check
    _
  $region27: #{transformer_encoder_layer.1} parent=0 // pred_check_branch
    %2134 = sbr.rel (0) target = $region29
  $region28: #{transformer_encoder_layer.1} parent=0 // pred_region
    _
  $region29: #{transformer_encoder_layer.1} parent=0 // pred_fallthru
    _

</llo_original>
